<compile_context>
chip_gen: v6e
topology: v6e:2x2x1
jax: 0.10.0
libtpu: 0.0.40
codegen_flags: <defaults>
</compile_context>

<pallas_src>
import math

import jax
import jax.numpy as jnp
from jax.experimental import pallas as pl
from jax.experimental.pallas import tpu as pltpu


# ---------------------------------------------------------------------------
# Kernel 1: fused im2col-GEMM conv + folded BatchNorm + ReLU
# ---------------------------------------------------------------------------
def _conv_bn_relu_kernel(p_ref, w_ref, b_ref, o_ref):
    # p_ref: (1, K, TS)    im2col patch tile   (K = Cin*KH*KW)
    # w_ref: (Cout, K)     BN-folded conv weights
    # b_ref: (Cout, 1)     BN-folded bias
    # o_ref: (1, Cout, TS)
    p = p_ref[0].astype(jnp.float32)
    w = w_ref[...].astype(jnp.float32)
    acc = jnp.dot(w, p, preferred_element_type=jnp.float32)   # MXU matmul
    acc = acc + b_ref[...]                                     # (Cout,1) bcast
    acc = jnp.maximum(acc, 0.0)                                # ReLU
    o_ref[0] = acc.astype(o_ref.dtype)


# ---------------------------------------------------------------------------
# Kernel 2: dense (stride-1) 3x3 max over a -inf padded input
# ---------------------------------------------------------------------------
def _maxpool3x3_dense_kernel(x_ref, o_ref):
    # x_ref: (1, C, Ho+2, Wo+2)   o_ref: (1, C, Ho, Wo)
    x = x_ref[0]
    ho, wo = o_ref.shape[2], o_ref.shape[3]
    m = x[:, 0:ho, 0:wo]
    for dh in range(3):
        for dw in range(3):
            if dh == 0 and dw == 0:
                continue
            m = jnp.maximum(m, x[:, dh:dh + ho, dw:dw + wo])
    o_ref[0] = m


def _pick_spatial_tile(s, max_tile=2048):
    """Largest multiple of 128 that divides s and is <= max_tile; else full s."""
    best = None
    t = 128
    while t <= min(s, max_tile):
        if s % t == 0:
            best = t
        t += 128
    return best if best is not None else s


@jax.jit
def stem_forward(x, conv_w, gamma, beta, running_mean, running_var, eps=1e-5):
    """conv(7,7,s2,p3,no-bias) -> BN(inference) -> ReLU -> maxpool(3,s2,p1)."""
    B, Cin, H, W = x.shape
    Cout, _, KH, KW = conv_w.shape
    stride, pad = 2, 3

    Ho = (H + 2 * pad - KH) // stride + 1
    Wo = (W + 2 * pad - KW) // stride + 1
    S = Ho * Wo
    K = Cin * KH * KW

    # ---- im2col (wrapper-side layout plumbing) ------------------------------
    x_pad = jnp.pad(x, ((0, 0), (0, 0), (pad, pad), (pad, pad)))
    cols = []
    for kh in range(KH):
        for kw in range(KW):
            cols.append(
                jax.lax.slice(
                    x_pad,
                    (0, 0, kh, kw),
                    (B, Cin, kh + stride * (Ho - 1) + 1, kw + stride * (Wo - 1) + 1),
                    (1, 1, stride, stride),
                ))  # (B, Cin, Ho, Wo)
    patches = jnp.stack(cols, axis=2)          # (B, Cin, KH*KW, Ho, Wo)
    patches = patches.reshape(B, K, S)         # K ordered as (ci, kh, kw)

    # ---- fold BatchNorm (inference mode) into the GEMM ----------------------
    # TODO(synk): BatchNorm is applied in inference mode (running stats); the
    # training-mode batch-statistics update is not computed in-kernel.
    scale = gamma * jax.lax.rsqrt(running_var + eps)          # (Cout,)
    shift = beta - running_mean * scale                       # (Cout,)
    w_eff = (conv_w.reshape(Cout, K).astype(jnp.float32)
             * scale[:, None]).astype(jnp.float32)            # (Cout, K)
    bias = shift.astype(jnp.float32).reshape(Cout, 1)         # (Cout, 1)

    # ---- Pallas fused GEMM + bias + ReLU, tiled over (batch, spatial) -------
    TS = _pick_spatial_tile(S)
    y = pl.pallas_call(
        _conv_bn_relu_kernel,
        out_shape=jax.ShapeDtypeStruct((B, Cout, S), x.dtype),
        grid_spec=pltpu.PrefetchScalarGridSpec(
            num_scalar_prefetch=0,
            grid=(B, S // TS),
            in_specs=[
                pl.BlockSpec((1, K, TS), lambda b, s: (b, 0, s)),
                pl.BlockSpec((Cout, K), lambda b, s: (0, 0)),
                pl.BlockSpec((Cout, 1), lambda b, s: (0, 0)),
            ],
            out_specs=pl.BlockSpec((1, Cout, TS), lambda b, s: (b, 0, s)),
        ),
        compiler_params=pltpu.CompilerParams(
            dimension_semantics=("parallel", "parallel"),
        ),
    )(patches, w_eff, bias)
    y = y.reshape(B, Cout, Ho, Wo)

    # ---- Pallas maxpool: dense 3x3 max on -inf-padded input, then stride-2 --
    Hp = (Ho + 2 - 3) // 2 + 1
    Wp = (Wo + 2 - 3) // 2 + 1
    neg = jnp.finfo(y.dtype).min
    y_pad = jnp.pad(y, ((0, 0), (0, 0), (1, 1), (1, 1)), constant_values=neg)

    dense = pl.pallas_call(
        _maxpool3x3_dense_kernel,
        out_shape=jax.ShapeDtypeStruct((B, Cout, Ho, Wo), y.dtype),
        grid_spec=pltpu.PrefetchScalarGridSpec(
            num_scalar_prefetch=0,
            grid=(B,),
            in_specs=[pl.BlockSpec((1, Cout, Ho + 2, Wo + 2),
                                   lambda b: (b, 0, 0, 0))],
            out_specs=pl.BlockSpec((1, Cout, Ho, Wo), lambda b: (b, 0, 0, 0)),
        ),
        compiler_params=pltpu.CompilerParams(
            dimension_semantics=("parallel",),
        ),
    )(y_pad)

    # stride-2 subsample of the dense max == MaxPool2d(kernel=3, stride=2, pad=1)
    out = dense[:, :, ::2, ::2][:, :, :Hp, :Wp]
    return out


if __name__ == "__main__":
    key = jax.random.PRNGKey(0)
    k_x, k_w, k_g, k_b, k_m, k_v = jax.random.split(key, 6)

    B, Cin, H, W = 2, 3, 16, 16
    Cout, KH, KW = 64, 7, 7
    eps = 1e-5

    x = jax.random.normal(k_x, (B, Cin, H, W), dtype=jnp.float32)
    # He-style init as in the PyTorch module: normal(0, sqrt(2 / (k*k*Cout)))
    std = math.sqrt(2.0 / (KH * KW * Cout))
    conv_w = std * jax.random.normal(k_w, (Cout, Cin, KH, KW), dtype=jnp.float32)
    gamma = 1.0 + 0.1 * jax.random.normal(k_g, (Cout,), dtype=jnp.float32)
    beta = 0.1 * jax.random.normal(k_b, (Cout,), dtype=jnp.float32)
    running_mean = 0.1 * jax.random.normal(k_m, (Cout,), dtype=jnp.float32)
    running_var = jax.random.uniform(k_v, (Cout,), dtype=jnp.float32,
                                     minval=0.5, maxval=1.5)

    out = stem_forward(x, conv_w, gamma, beta, running_mean, running_var)
    out = jax.block_until_ready(out)

    # ---- pure-JAX reference (same semantics as the PyTorch forward) --------
    conv = jax.lax.conv_general_dilated(
        x, conv_w, window_strides=(2, 2), padding=((3, 3), (3, 3)),
        dimension_numbers=("NCHW", "OIHW", "NCHW"),
        precision=jax.lax.Precision.HIGHEST)
    bn = ((conv - running_mean[None, :, None, None])
          * jax.lax.rsqrt(running_var[None, :, None, None] + eps)
          * gamma[None, :, None, None] + beta[None, :, None, None])
    act = jnp.maximum(bn, 0.0)
    ref = jax.lax.reduce_window(
        act, -jnp.inf, jax.lax.max,
        window_dimensions=(1, 1, 3, 3), window_strides=(1, 1, 2, 2),
        padding=((0, 0), (0, 0), (1, 1), (1, 1)))

    assert out.shape == ref.shape, (out.shape, ref.shape)
    max_err = float(jnp.max(jnp.abs(out - ref)))
    assert jnp.allclose(out, ref, atol=2e-3, rtol=2e-3), f"max_err={max_err}"

    print("KERNEL_OK")
</pallas_src>

<mosaic_0001>
module attributes {stable_mosaic.version = 11 : i64} {
  func.func @_conv_bn_relu_kernel(%arg0: i32, %arg1: i32, %arg2: memref<1x147x64xf32, #tpu.memory_space<vmem>>, %arg3: memref<64x147xf32, #tpu.memory_space<vmem>>, %arg4: memref<64x1xf32, #tpu.memory_space<vmem>>, %arg5: memref<1x64x64xf32, #tpu.memory_space<vmem>>) attributes {dimension_semantics = [#tpu.dimension_semantics<parallel>, #tpu.dimension_semantics<parallel>], iteration_bounds = array<i64: 2, 1>, scalar_prefetch = 0 : i64, scratch_operands = 0 : i64, tpu.core_type = #tpu.core_type<tc>, window_params = [{transform_indices = @transform_0, window_bounds = array<i64: 1, 147, 64>}, {pipeline_mode = #tpu.pipeline_mode<synchronous>, transform_indices = @transform_1, window_bounds = array<i64: 64, 147>}, {pipeline_mode = #tpu.pipeline_mode<synchronous>, transform_indices = @transform_2, window_bounds = array<i64: 64, 1>}, {transform_indices = @transform_3, window_bounds = array<i64: 1, 64, 64>}]} {
    %c0 = arith.constant 0 : index
    %c0_0 = arith.constant 0 : index
    %c0_1 = arith.constant 0 : index
    %0 = vector.load %arg2[%c0, %c0_0, %c0_1] : memref<1x147x64xf32, #tpu.memory_space<vmem>>, vector<1x147x64xf32>
    %1 = vector.shape_cast %0 : vector<1x147x64xf32> to vector<147x64xf32>
    %c0_2 = arith.constant 0 : index
    %c0_3 = arith.constant 0 : index
    %2 = vector.load %arg3[%c0_2, %c0_3] : memref<64x147xf32, #tpu.memory_space<vmem>>, vector<64x147xf32>
    %cst = arith.constant dense<0.000000e+00> : vector<64x64xf32>
    %3 = tpu.matmul %2, %1, %cst {dimension_numbers = #tpu.dot_dimension_numbers<[1], [0], [0], [1], [0, 0, 1, 1], [], []>} : vector<64x147xf32>, vector<147x64xf32>, vector<64x64xf32> -> vector<64x64xf32>
    %c0_4 = arith.constant 0 : index
    %c0_5 = arith.constant 0 : index
    %4 = vector.load %arg4[%c0_4, %c0_5] : memref<64x1xf32, #tpu.memory_space<vmem>>, vector<64x1xf32>
    %5 = vector.broadcast %4 : vector<64x1xf32> to vector<64x64xf32>
    %6 = arith.addf %3, %5 : vector<64x64xf32>
    %cst_6 = arith.constant 0.000000e+00 : f32
    %7 = vector.broadcast %cst_6 : f32 to vector<64x64xf32>
    %8 = arith.maximumf %6, %7 : vector<64x64xf32>
    %c0_7 = arith.constant 0 : index
    %c0_8 = arith.constant 0 : index
    %c0_9 = arith.constant 0 : index
    %9 = vector.load %arg5[%c0_7, %c0_8, %c0_9] : memref<1x64x64xf32, #tpu.memory_space<vmem>>, vector<1x64x64xf32>
    %10 = vector.shape_cast %9 : vector<1x64x64xf32> to vector<64x64xf32>
    %11 = vector.shape_cast %8 : vector<64x64xf32> to vector<1x64x64xf32>
    tpu.vector_store %arg5[%c0_7, %c0_8, %c0_9], %11 {strides = array<i32>} : memref<1x64x64xf32, #tpu.memory_space<vmem>>, vector<1x64x64xf32>,
    return
  }
  func.func @transform_0(%arg0: i32, %arg1: i32) -> (i32, i32, i32) {
    %c0_i32 = arith.constant 0 : i32
    %c0_i32_0 = arith.constant 0 : i32
    return %arg0, %c0_i32, %arg1 : i32, i32, i32
  }
  func.func @transform_1(%arg0: i32, %arg1: i32) -> (i32, i32) {
    %c0_i32 = arith.constant 0 : i32
    %c0_i32_0 = arith.constant 0 : i32
    %c0_i32_1 = arith.constant 0 : i32
    return %c0_i32, %c0_i32_0 : i32, i32
  }
  func.func @transform_2(%arg0: i32, %arg1: i32) -> (i32, i32) {
    %c0_i32 = arith.constant 0 : i32
    %c0_i32_0 = arith.constant 0 : i32
    %c0_i32_1 = arith.constant 0 : i32
    return %c0_i32, %c0_i32_0 : i32, i32
  }
  func.func @transform_3(%arg0: i32, %arg1: i32) -> (i32, i32, i32) {
    %c0_i32 = arith.constant 0 : i32
    %c0_i32_0 = arith.constant 0 : i32
    return %arg0, %c0_i32, %arg1 : i32, i32, i32
  }
}

module attributes {stable_mosaic.version = 11 : i64} {
  func.func @_maxpool3x3_dense_kernel(%arg0: i32, %arg1: memref<1x64x10x10xf32, #tpu.memory_space<vmem>>, %arg2: memref<1x64x8x8xf32, #tpu.memory_space<vmem>>) attributes {dimension_semantics = [#tpu.dimension_semantics<parallel>], iteration_bounds = array<i64: 2>, scalar_prefetch = 0 : i64, scratch_operands = 0 : i64, tpu.core_type = #tpu.core_type<tc>, window_params = [{transform_indices = @transform_0, window_bounds = array<i64: 1, 64, 10, 10>}, {transform_indices = @transform_1, window_bounds = array<i64: 1, 64, 8, 8>}]} {
    %c0 = arith.constant 0 : index
    %c0_0 = arith.constant 0 : index
    %c0_1 = arith.constant 0 : index
    %c0_2 = arith.constant 0 : index
    %0 = vector.load %arg1[%c0, %c0_0, %c0_1, %c0_2] : memref<1x64x10x10xf32, #tpu.memory_space<vmem>>, vector<1x64x10x10xf32>
    %1 = vector.shape_cast %0 : vector<1x64x10x10xf32> to vector<64x10x10xf32>
    %2 = vector.extract_strided_slice %1 {offsets = [0, 0, 0], sizes = [64, 8, 8], strides = [1, 1, 1]} : vector<64x10x10xf32> to vector<64x8x8xf32>
    %3 = vector.extract_strided_slice %1 {offsets = [0, 0, 1], sizes = [64, 8, 8], strides = [1, 1, 1]} : vector<64x10x10xf32> to vector<64x8x8xf32>
    %4 = arith.maximumf %2, %3 : vector<64x8x8xf32>
    %5 = vector.extract_strided_slice %1 {offsets = [0, 0, 2], sizes = [64, 8, 8], strides = [1, 1, 1]} : vector<64x10x10xf32> to vector<64x8x8xf32>
    %6 = arith.maximumf %4, %5 : vector<64x8x8xf32>
    %7 = vector.extract_strided_slice %1 {offsets = [0, 1, 0], sizes = [64, 8, 8], strides = [1, 1, 1]} : vector<64x10x10xf32> to vector<64x8x8xf32>
    %8 = arith.maximumf %6, %7 : vector<64x8x8xf32>
    %9 = vector.extract_strided_slice %1 {offsets = [0, 1, 1], sizes = [64, 8, 8], strides = [1, 1, 1]} : vector<64x10x10xf32> to vector<64x8x8xf32>
    %10 = arith.maximumf %8, %9 : vector<64x8x8xf32>
    %11 = vector.extract_strided_slice %1 {offsets = [0, 1, 2], sizes = [64, 8, 8], strides = [1, 1, 1]} : vector<64x10x10xf32> to vector<64x8x8xf32>
    %12 = arith.maximumf %10, %11 : vector<64x8x8xf32>
    %13 = vector.extract_strided_slice %1 {offsets = [0, 2, 0], sizes = [64, 8, 8], strides = [1, 1, 1]} : vector<64x10x10xf32> to vector<64x8x8xf32>
    %14 = arith.maximumf %12, %13 : vector<64x8x8xf32>
    %15 = vector.extract_strided_slice %1 {offsets = [0, 2, 1], sizes = [64, 8, 8], strides = [1, 1, 1]} : vector<64x10x10xf32> to vector<64x8x8xf32>
    %16 = arith.maximumf %14, %15 : vector<64x8x8xf32>
    %17 = vector.extract_strided_slice %1 {offsets = [0, 2, 2], sizes = [64, 8, 8], strides = [1, 1, 1]} : vector<64x10x10xf32> to vector<64x8x8xf32>
    %18 = arith.maximumf %16, %17 : vector<64x8x8xf32>
    %c0_3 = arith.constant 0 : index
    %c0_4 = arith.constant 0 : index
    %c0_5 = arith.constant 0 : index
    %c0_6 = arith.constant 0 : index
    %19 = vector.load %arg2[%c0_3, %c0_4, %c0_5, %c0_6] : memref<1x64x8x8xf32, #tpu.memory_space<vmem>>, vector<1x64x8x8xf32>
    %20 = vector.shape_cast %19 : vector<1x64x8x8xf32> to vector<64x8x8xf32>
    %21 = vector.shape_cast %18 : vector<64x8x8xf32> to vector<1x64x8x8xf32>
    tpu.vector_store %arg2[%c0_3, %c0_4, %c0_5, %c0_6], %21 {strides = array<i32>} : memref<1x64x8x8xf32, #tpu.memory_space<vmem>>, vector<1x64x8x8xf32>,
    return
  }
  func.func @transform_0(%arg0: i32) -> (i32, i32, i32, i32) {
    %c0_i32 = arith.constant 0 : i32
    %c0_i32_0 = arith.constant 0 : i32
    %c0_i32_1 = arith.constant 0 : i32
    %c0_i32_2 = arith.constant 0 : i32
    return %arg0, %c0_i32, %c0_i32_0, %c0_i32_1 : i32, i32, i32, i32
  }
  func.func @transform_1(%arg0: i32) -> (i32, i32, i32, i32) {
    %c0_i32 = arith.constant 0 : i32
    %c0_i32_0 = arith.constant 0 : i32
    %c0_i32_1 = arith.constant 0 : i32
    %c0_i32_2 = arith.constant 0 : i32
    return %arg0, %c0_i32, %c0_i32_0, %c0_i32_1 : i32, i32, i32, i32
  }
}

</mosaic_0001>

<llo_original>
// kernel: stem_forward.2
$region0: #{stem_forward.2}
  #allocation0 [shape = 'u32[]', space=smem, size = 0x4, offset = 0x4, fixed_abs, tag = 'smem constant byte address 0x4 - core index']
  #allocation1 [shape = 'u32[144,128]{1,0:T(1,128)}', space=vmem, size = 0x12000, scoped, tag = 'internal scratch']
  %s0 = inlined_call_operand.vmem [shape: f32[2,147,64], index: 0, kind: input, shape index: {}]
  %s1 = inlined_call_operand.vmem [shape: f32[64,147], index: 1, kind: input, shape index: {}]
  %s2 = inlined_call_operand.vmem [shape: f32[64,1], index: 2, kind: input, shape index: {}]
  %s3 = inlined_call_operand.vmem [shape: f32[2,64,64], index: 3, kind: output, shape index: {}]
  %s4 = sld [smem:[#allocation0]]
  $region45: #{stem_forward.2} parent=0
    _
  %s6 = ssub.s32 1, %s4
  %s7 = scalar_select 0, %s6, %s4
  loop: start=0, step=1, limit=4
  $region2: #{stem_forward.2} parent=0 // loop_pre_header
    _
  $region3: #{stem_forward.2} parent=0 // loop_header
    %s9 = sphi 0, %s13
    %p10 = scmp.ge.s32.totalorder %s9, 4
    %s16 = sphi 0, %s28
    %s17 = sphi 0, %s24
    %s18 = sphi 0, %s16
    %s19 = sphi 0, %s17
    %s20 = sphi 0, %s18
    %s21 = sphi 0, %s19
    %s33 = sphi 0, %s35
    %s36 = sphi 0, %s33
    %s37 = sphi 0, %s36
    %s53 = sphi 0, %s37
    %s57 = sphi 0, %s57
    %s59 = sphi 0, %s57
    %s60 = sphi 0, %s59
    %s74 = sphi 0, %s60
    %s78 = sphi 0, %s78
    %s80 = sphi 0, %s78
    %s81 = sphi 0, %s80
    %s95 = sphi 0, %s81
    %s103 = sphi 0, %s105
    %s106 = sphi 0, %s103
    %s107 = sphi 0, %s106
    %s123 = sphi 0, %s107
  $region4: #{stem_forward.2} parent=0 // loop_header_branch
    %12 = sbr.rel (%p10) target = $region8
  $region5: #{stem_forward.2} parent=0 // loop_body
    %s14 = ssub.s32 %s9, 1
    %s15 = ssub.s32 %s9, 2
    %s22 = sadd.s32 1, %s17
    %p23 = scmp.ge.s32.totalorder %s22, 1
    %s24 = scalar_select %p23, 0, %s22
    %s25 = sadd.s32 1, %s16
    %s26 = scalar_select %p23, %s25, %s16
    %p27 = scmp.ge.s32.totalorder %s26, 2
    %s28 = scalar_select %p27, 0, %s26
    %s29 = ssub.s32 %s16, %s28
    %s30 = ssub.s32 %s17, %s24
    %s31 = sor.u32 %s29, %s30
    %p32 = scmp.eq.s32.totalorder %s31, 0
    %s34 = sadd.s32 %s33, 1
    %s35 = scalar_select %p32, %s33, %s34
    %p38 = pneg %p32
    %p39 = scmp.eq.s32.totalorder %s9, 1
    %p40 = por %p38, %p39
    %p41 = scmp.ne.s32.totalorder %s33, %s36
    %p42 = scmp.eq.s32.totalorder %s9, 0
    %p43 = por %p41, %p42
    %p44 = scmp.ne.s32.totalorder %s33, %s36
    %p45 = scmp.eq.s32.totalorder %s14, 1
    %p46 = por %p44, %p45
    %p47 = scmp.ne.s32.totalorder %s36, %s37
    %p48 = scmp.eq.s32.totalorder %s14, 0
    %p49 = por %p47, %p48
    %p50 = scmp.ne.s32.totalorder %s36, %s37
    %p51 = scmp.eq.s32.totalorder %s15, 1
    %p52 = por %p50, %p51
    %p54 = scmp.ne.s32.totalorder %s37, %s53
    %p55 = scmp.eq.s32.totalorder %s15, 0
    %p56 = por %p54, %p55
    %s58 = sadd.s32 %s57, 1
    %p61 = scmp.eq.s32.totalorder %s9, 1
    %p62 = scmp.ne.s32.totalorder %s57, %s59
    %p63 = scmp.eq.s32.totalorder %s9, 0
    %p64 = por %p62, %p63
    %p65 = scmp.ne.s32.totalorder %s57, %s59
    %p66 = scmp.eq.s32.totalorder %s14, 1
    %p67 = por %p65, %p66
    %p68 = scmp.ne.s32.totalorder %s59, %s60
    %p69 = scmp.eq.s32.totalorder %s14, 0
    %p70 = por %p68, %p69
    %p71 = scmp.ne.s32.totalorder %s59, %s60
    %p72 = scmp.eq.s32.totalorder %s15, 1
    %p73 = por %p71, %p72
    %p75 = scmp.ne.s32.totalorder %s60, %s74
    %p76 = scmp.eq.s32.totalorder %s15, 0
    %p77 = por %p75, %p76
    %s79 = sadd.s32 %s78, 1
    %p82 = scmp.eq.s32.totalorder %s9, 1
    %p83 = scmp.ne.s32.totalorder %s78, %s80
    %p84 = scmp.eq.s32.totalorder %s9, 0
    %p85 = por %p83, %p84
    %p86 = scmp.ne.s32.totalorder %s78, %s80
    %p87 = scmp.eq.s32.totalorder %s14, 1
    %p88 = por %p86, %p87
    %p89 = scmp.ne.s32.totalorder %s80, %s81
    %p90 = scmp.eq.s32.totalorder %s14, 0
    %p91 = por %p89, %p90
    %p92 = scmp.ne.s32.totalorder %s80, %s81
    %p93 = scmp.eq.s32.totalorder %s15, 1
    %p94 = por %p92, %p93
    %p96 = scmp.ne.s32.totalorder %s81, %s95
    %p97 = scmp.eq.s32.totalorder %s15, 0
    %p98 = por %p96, %p97
    %s99 = ssub.s32 %s16, %s28
    %s100 = ssub.s32 %s17, %s24
    %s101 = sor.u32 %s99, %s100
    %p102 = scmp.eq.s32.totalorder %s101, 0
    %s104 = sadd.s32 %s103, 1
    %s105 = scalar_select %p102, %s103, %s104
    %p108 = pneg %p102
    %p109 = scmp.eq.s32.totalorder %s9, 1
    %p110 = por %p108, %p109
    %p111 = scmp.ne.s32.totalorder %s103, %s106
    %p112 = scmp.eq.s32.totalorder %s9, 0
    %p113 = por %p111, %p112
    %p114 = scmp.ne.s32.totalorder %s103, %s106
    %p115 = scmp.eq.s32.totalorder %s14, 1
    %p116 = por %p114, %p115
    %p117 = scmp.ne.s32.totalorder %s106, %s107
    %p118 = scmp.eq.s32.totalorder %s14, 0
    %p119 = por %p117, %p118
    %p120 = scmp.ne.s32.totalorder %s106, %s107
    %p121 = scmp.eq.s32.totalorder %s15, 1
    %p122 = por %p120, %p121
    %p124 = scmp.ne.s32.totalorder %s107, %s123
    %p125 = scmp.eq.s32.totalorder %s15, 0
    %p126 = por %p124, %p125
    %p127 = scmp.le.s32.totalorder 1, %s9
    %p128 = scmp.lt.s32.totalorder %s9, 3
    %p129 = pnand %p127, %p128
    %p130 = pneg %p129
    // Predicated region
    $region9: #{stem_forward.2} parent=5 // pred_check
      _
    $region10: #{stem_forward.2} parent=5 // pred_check_branch
      %132 = sbr.rel (%p129) target = $region12
    $region11: #{stem_forward.2} parent=5 // pred_region
      %s133 = ssub.s32 %s9, 1
      // Predicated region
      $region13: #{stem_forward.2} parent=11 // pred_check
        %p134 = pneg %p70
      $region14: #{stem_forward.2} parent=11 // pred_check_branch
        %136 = sbr.rel (%p134) target = $region16
      $region15: #{stem_forward.2} parent=11 // pred_region
        _
      $region16: #{stem_forward.2} parent=11 // pred_fallthru
        _
      // Predicated region
      $region17: #{stem_forward.2} parent=11 // pred_check
        %p137 = pneg %p91
      $region18: #{stem_forward.2} parent=11 // pred_check_branch
        %139 = sbr.rel (%p137) target = $region20
      $region19: #{stem_forward.2} parent=11 // pred_region
        _
      $region20: #{stem_forward.2} parent=11 // pred_fallthru
        _
    $region12: #{stem_forward.2} parent=5 // pred_fallthru
      _
    %p140 = scmp.lt.s32.totalorder %s9, 2
    // Predicated region
    $region21: #{stem_forward.2} parent=5 // pred_check
      %p141 = pneg %p140
    $region22: #{stem_forward.2} parent=5 // pred_check_branch
      %143 = sbr.rel (%p141) target = $region24
    $region23: #{stem_forward.2} parent=5 // pred_region
      // Predicated region
      $region25: #{stem_forward.2} parent=23 // pred_check
        %p144 = pneg %p43
      $region26: #{stem_forward.2} parent=23 // pred_check_branch
        %146 = sbr.rel (%p144) target = $region28
      $region27: #{stem_forward.2} parent=23 // pred_region
        %p147 = scmp.lt.s32.totalorder %s16, 1
        %s148 = scalar_select %p147, %s16, 1
        %p149 = scmp.lt.s32.totalorder %s17, 0
        %s150 = scalar_select %p149, %s17, 0
        %s151 = smul.addr %s148, 19
        %s152 = sadd.s32 %s150, %s151
        %s153 = smul.addr %s152, 8
        %s154 = scalar_lea.vmem %s0, %s153
      $region28: #{stem_forward.2} parent=23 // pred_fallthru
        _
    $region24: #{stem_forward.2} parent=5 // pred_fallthru
      _
    %p155 = scmp.le.s32.totalorder 1, %s9
    %p156 = scmp.lt.s32.totalorder %s9, 3
    %p157 = pnand %p155, %p156
    %p158 = pneg %p157
    // Predicated region
    $region29: #{stem_forward.2} parent=5 // pred_check
      _
    $region30: #{stem_forward.2} parent=5 // pred_check_branch
      %160 = sbr.rel (%p157) target = $region32
    $region31: #{stem_forward.2} parent=5 // pred_region
      %s161 = ssub.s32 %s9, 1
      %p162 = scmp.lt.s32.totalorder %s18, 1
      %s163 = scalar_select %p162, %s18, 1
      %p164 = scmp.lt.s32.totalorder %s19, 0
      %s165 = scalar_select %p164, %s19, 0
      %s166 = smul.addr %s163, 19
      %s167 = sadd.s32 %s165, %s166
      %s168 = smul.addr %s167, 8
      %s169 = scalar_lea.vmem %s0, %s168
      %p170 = pneg %p49
      %p171 = pneg %p46
      %p172 = pneg %p70
      %p173 = pneg %p67
      %p174 = pneg %p91
      %p175 = pneg %p88
      %p176 = pneg %p119
      %p177 = pneg %p116
      %p178 = scmp.lt.s32.totalorder %s18, 1
      %s179 = scalar_select %p178, %s18, 1
      %p180 = scmp.lt.s32.totalorder %s19, 0
      %s181 = scalar_select %p180, %s19, 0
      %s182 = smul.addr %s179, 8
      %s183 = sadd.s32 %s181, %s182
      %s184 = smul.addr %s183, 8
      %s185 = scalar_lea.vmem %s3, %s184
      %p186 = scmp.lt.s32.totalorder %s18, 1
      %s187 = scalar_select %p186, %s18, 1
      %p188 = scmp.lt.s32.totalorder %s19, 0
      %s189 = scalar_select %p188, %s19, 0
      %s190 = smul.addr %s187, 19
      %s191 = sadd.s32 %s189, %s190
      %s192 = smul.addr %s191, 8
      %s193 = scalar_lea.vmem %s0, %s192
      %p194 = scmp.lt.s32.totalorder %s18, 1
      %s195 = scalar_select %p194, %s18, 1
      %p196 = scmp.lt.s32.totalorder %s19, 0
      %s197 = scalar_select %p196, %s19, 0
      %s198 = smul.addr %s195, 8
      %s199 = sadd.s32 %s197, %s198
      %s200 = smul.addr %s199, 8
      %s201 = scalar_lea.vmem %s3, %s200
      %v202 = vld [vmem:[%s193] sm:$0xff]
      %v203 = vld [vmem:[%s193 + $0x8] sm:$0xff]
      %v204 = vld [vmem:[%s193 + $0x10] sm:$0xff]
      %v205 = vld [vmem:[%s193 + $0x18] sm:$0xff]
      %v206 = vld [vmem:[%s193 + $0x20] sm:$0xff]
      %v207 = vld [vmem:[%s193 + $0x28] sm:$0xff]
      %v208 = vld [vmem:[%s193 + $0x30] sm:$0xff]
      %v209 = vld [vmem:[%s193 + $0x38] sm:$0xff]
      %v210 = vld [vmem:[%s193 + $0x40] sm:$0xff]
      %v211 = vld [vmem:[%s193 + $0x48] sm:$0xff]
      %v212 = vld [vmem:[%s193 + $0x50] sm:$0xff]
      %v213 = vld [vmem:[%s193 + $0x58] sm:$0xff]
      %v214 = vld [vmem:[%s193 + $0x60] sm:$0xff]
      %v215 = vld [vmem:[%s193 + $0x68] sm:$0xff]
      %v216 = vld [vmem:[%s193 + $0x70] sm:$0xff]
      %v217 = vld [vmem:[%s193 + $0x78] sm:$0xff]
      %v218 = vld [vmem:[%s193 + $0x80] sm:$0xff]
      %v219 = vld [vmem:[%s193 + $0x88] sm:$0xff]
      %v220 = vld [vmem:[%s193 + $0x90] sm:$0x7]
      %v221 = vld [vmem:[%s1] sm:$0xff]
      %v222 = vld [vmem:[%s1 + $0x8] sm:$0xff]
      %v223 = vld [vmem:[%s1 + $0x10] sm:$0xff]
      %v224 = vld [vmem:[%s1 + $0x18] sm:$0xff]
      %v225 = vld [vmem:[%s1 + $0x20] sm:$0xff]
      %v226 = vld [vmem:[%s1 + $0x28] sm:$0xff]
      %v227 = vld [vmem:[%s1 + $0x30] sm:$0xff]
      %v228 = vld [vmem:[%s1 + $0x38] sm:$0xff]
      %v229 = vld [vmem:[%s1 + $0x40] sm:$0xff]
      %v230 = vld [vmem:[%s1 + $0x48] sm:$0xff]
      %v231 = vld [vmem:[%s1 + $0x50] sm:$0xff]
      %v232 = vld [vmem:[%s1 + $0x58] sm:$0xff]
      %v233 = vld [vmem:[%s1 + $0x60] sm:$0xff]
      %v234 = vld [vmem:[%s1 + $0x68] sm:$0xff]
      %v235 = vld [vmem:[%s1 + $0x70] sm:$0xff]
      %v236 = vld [vmem:[%s1 + $0x78] sm:$0xff]
      %v237 = vld [vmem:[%s2] sm:$0xff]
      %v238 = vld [vmem:[%s2 + $0x8] sm:$0xff]
      %v239 = vld [vmem:[%s2 + $0x10] sm:$0xff]
      %v240 = vld [vmem:[%s2 + $0x18] sm:$0xff]
      %v241 = vld [vmem:[%s2 + $0x20] sm:$0xff]
      %v242 = vld [vmem:[%s2 + $0x28] sm:$0xff]
      %v243 = vld [vmem:[%s2 + $0x30] sm:$0xff]
      %v244 = vld [vmem:[%s2 + $0x38] sm:$0xff]
      %246 = vset.pattern.permute.xlu0 0
      %247 = vperm.xlu0 %246, %v237
      %v248 = vpop.permute.xlu0 %247
      %251 = vset.pattern.permute.xlu0 0
      %252 = vperm.xlu0 %251, %v238
      %v253 = vpop.permute.xlu0 %252
      %256 = vset.pattern.permute.xlu0 0
      %257 = vperm.xlu0 %256, %v239
      %v258 = vpop.permute.xlu0 %257
      %261 = vset.pattern.permute.xlu0 0
      %262 = vperm.xlu0 %261, %v240
      %v263 = vpop.permute.xlu0 %262
      %266 = vset.pattern.permute.xlu0 0
      %267 = vperm.xlu0 %266, %v241
      %v268 = vpop.permute.xlu0 %267
      %271 = vset.pattern.permute.xlu0 0
      %272 = vperm.xlu0 %271, %v242
      %v273 = vpop.permute.xlu0 %272
      %276 = vset.pattern.permute.xlu0 0
      %277 = vperm.xlu0 %276, %v243
      %v278 = vpop.permute.xlu0 %277
      %281 = vset.pattern.permute.xlu0 0
      %282 = vperm.xlu0 %281, %v244
      %v283 = vpop.permute.xlu0 %282
      %vm285 = vcmask 154624
      %v287 = vsel %vm285, %v222, 0
      %v290 = vsel %vm285, %v224, 0
      %v293 = vsel %vm285, %v226, 0
      %v296 = vsel %vm285, %v228, 0
      %v299 = vsel %vm285, %v230, 0
      %v302 = vsel %vm285, %v232, 0
      %v305 = vsel %vm285, %v234, 0
      %v308 = vsel %vm285, %v236, 0
      %vm310 = vcmask 1042432
      %v312 = vsel %vm310, %v220, 0
      %314 = vmatprep.subr.mxu0 0.0
      %315 = vmatpush1.msra.mxu0 %v217
      %316 = vmatprep.subr.mxu0 0.0
      %317 = vmatpush1.msra.mxu0 %v216
      %318 = vmatprep.subr.mxu0 0.0
      %319 = vmatpush1.msra.mxu0 %v215
      %320 = vmatprep.subr.mxu0 0.0
      %321 = vmatpush1.msra.mxu0 %v214
      %322 = vmatprep.subr.mxu0 0.0
      %323 = vmatpush1.msra.mxu0 %v213
      %324 = vmatprep.subr.mxu0 0.0
      %325 = vmatpush1.msra.mxu0 %v212
      %326 = vmatprep.subr.mxu0 0.0
      %327 = vmatpush1.msra.mxu0 %v211
      %328 = vmatprep.subr.mxu0 0.0
      %329 = vmatpush1.msra.mxu0 %v210
      %330 = vmatprep.subr.mxu0 0.0
      %331 = vmatpush1.msra.mxu0 %v209
      %332 = vmatprep.subr.mxu0 0.0
      %333 = vmatpush1.msra.mxu0 %v208
      %334 = vmatprep.subr.mxu0 0.0
      %335 = vmatpush1.msra.mxu0 %v207
      %336 = vmatprep.subr.mxu0 0.0
      %337 = vmatpush1.msra.mxu0 %v206
      %338 = vmatprep.subr.mxu0 0.0
      %339 = vmatpush1.msra.mxu0 %v205
      %340 = vmatprep.subr.mxu0 0.0
      %341 = vmatpush1.msra.mxu0 %v204
      %342 = vmatprep.subr.mxu0 0.0
      %343 = vmatpush1.msra.mxu0 %v203
      %344 = vmatprep.subr.mxu0 0.0
      %345 = vmatpush1.msra.mxu0 %v202
      %346 = vmatprep.subr.mxu0 0.0
      %347 = vmatpush2.msra.mxu0 0.0
      %348 = vmatprep.subr.mxu0 0.0
      %349 = vmatpush2.msra.mxu0 0.0
      %350 = vmatprep.subr.mxu0 0.0
      %351 = vmatpush2.msra.mxu0 0.0
      %352 = vmatprep.subr.mxu0 0.0
      %353 = vmatpush2.msra.mxu0 0.0
      %354 = vmatprep.subr.mxu0 0.0
      %355 = vmatpush2.msra.mxu0 0.0
      %356 = vmatprep.subr.mxu0 0.0
      %357 = vmatpush2.msra.mxu0 0.0
      %358 = vmatprep.subr.mxu0 0.0
      %359 = vmatpush2.msra.mxu0 0.0
      %360 = vmatprep.subr.mxu0 0.0
      %361 = vmatpush2.msra.mxu0 0.0
      %362 = vmatprep.subr.mxu0 0.0
      %363 = vmatpush2.msra.mxu0 0.0
      %364 = vmatprep.subr.mxu0 0.0
      %365 = vmatpush2.msra.mxu0 0.0
      %366 = vmatprep.subr.mxu0 0.0
      %367 = vmatpush2.msra.mxu0 0.0
      %368 = vmatprep.subr.mxu0 0.0
      %369 = vmatpush2.msra.mxu0 0.0
      %370 = vmatprep.subr.mxu0 0.0
      %371 = vmatpush2.msra.mxu0 0.0
      %372 = vmatprep.subr.mxu0 0.0
      %373 = vmatpush2.msra.mxu0 %v312
      %374 = vmatprep.subr.mxu0 0.0
      %375 = vmatpush2.msra.mxu0 %v219
      %376 = vmatprep.subr.mxu0 0.0
      %377 = vmatpush2.msra.mxu0 %v218
      %378 = vmatprep.mubr.f32.mxu0 %v287
      %379 = vmatmul.mubr.f32.gmra.mxu0 %v221
      %v380 = vpop.f32.mrf.mxu0
      %v381 = vadd.f32 %v248, %v380
      %v382 = vpop.f32.mrf.mxu0
      %383 = vmatprep.mubr.f32.mxu0 %v290
      %384 = vmatmul.mubr.f32.gmra.mxu0 %v223
      %v385 = vpop.f32.mrf.mxu0
      %v386 = vadd.f32 %v253, %v385
      %v387 = vpop.f32.mrf.mxu0
      %388 = vmatprep.mubr.f32.mxu0 %v293
      %389 = vmatmul.mubr.f32.gmra.mxu0 %v225
      %v390 = vpop.f32.mrf.mxu0
      %v391 = vadd.f32 %v258, %v390
      %v392 = vpop.f32.mrf.mxu0
      %393 = vmatprep.mubr.f32.mxu0 %v296
      %394 = vmatmul.mubr.f32.gmra.mxu0 %v227
      %v395 = vpop.f32.mrf.mxu0
      %v396 = vadd.f32 %v263, %v395
      %v397 = vpop.f32.mrf.mxu0
      %398 = vmatprep.mubr.f32.mxu0 %v299
      %399 = vmatmul.mubr.f32.gmra.mxu0 %v229
      %v400 = vpop.f32.mrf.mxu0
      %v401 = vadd.f32 %v268, %v400
      %v402 = vpop.f32.mrf.mxu0
      %403 = vmatprep.mubr.f32.mxu0 %v302
      %404 = vmatmul.mubr.f32.gmra.mxu0 %v231
      %v405 = vpop.f32.mrf.mxu0
      %v406 = vadd.f32 %v273, %v405
      %v407 = vpop.f32.mrf.mxu0
      %408 = vmatprep.mubr.f32.mxu0 %v305
      %409 = vmatmul.mubr.f32.gmra.mxu0 %v233
      %v410 = vpop.f32.mrf.mxu0
      %v411 = vadd.f32 %v278, %v410
      %v412 = vpop.f32.mrf.mxu0
      %413 = vmatprep.mubr.f32.mxu0 %v308
      %414 = vmatmul.mubr.f32.gmra.mxu0 %v235
      %v415 = vpop.f32.mrf.mxu0
      %v416 = vadd.f32 %v283, %v415
      %v417 = vpop.f32.mrf.mxu0
      %418 = vdwg.mxu0
      %v419 = vmax.f32 %v381, 0.0
      %v420 = vmax.f32 %v386, 0.0
      %v421 = vmax.f32 %v391, 0.0
      %v422 = vmax.f32 %v396, 0.0
      %v423 = vmax.f32 %v401, 0.0
      %v424 = vmax.f32 %v406, 0.0
      %v425 = vmax.f32 %v411, 0.0
      %v426 = vmax.f32 %v416, 0.0
      %vm427 = vcmask 523264
      %428 = vst.msk [vmem:[%s201] sm:$0xff] %vm427, %v419
      %429 = vst.msk [vmem:[%s201 + $0x8] sm:$0xff] %vm427, %v420
      %430 = vst.msk [vmem:[%s201 + $0x10] sm:$0xff] %vm427, %v421
      %431 = vst.msk [vmem:[%s201 + $0x18] sm:$0xff] %vm427, %v422
      %432 = vst.msk [vmem:[%s201 + $0x20] sm:$0xff] %vm427, %v423
      %433 = vst.msk [vmem:[%s201 + $0x28] sm:$0xff] %vm427, %v424
      %434 = vst.msk [vmem:[%s201 + $0x30] sm:$0xff] %vm427, %v425
      %435 = vst.msk [vmem:[%s201 + $0x38] sm:$0xff] %vm427, %v426
      %p436 = scmp.lt.s32.totalorder %s18, 1
      %s437 = scalar_select %p436, %s18, 1
      %p438 = scmp.lt.s32.totalorder %s19, 0
      %s439 = scalar_select %p438, %s19, 0
      %s440 = smul.addr %s437, 8
      %s441 = sadd.s32 %s439, %s440
      %s442 = smul.addr %s441, 8
      %s443 = scalar_lea.vmem %s3, %s442
      // Predicated region
      $region33: #{stem_forward.2} parent=31 // pred_check
        %p444 = pneg %p116
      $region34: #{stem_forward.2} parent=31 // pred_check_branch
        %446 = sbr.rel (%p444) target = $region36
      $region35: #{stem_forward.2} parent=31 // pred_region
        _
      $region36: #{stem_forward.2} parent=31 // pred_fallthru
        _
    $region32: #{stem_forward.2} parent=5 // pred_fallthru
      _
    %p447 = scmp.le.s32.totalorder 2, %s9
    // Predicated region
    $region37: #{stem_forward.2} parent=5 // pred_check
      %p448 = pneg %p447
    $region38: #{stem_forward.2} parent=5 // pred_check_branch
      %450 = sbr.rel (%p448) target = $region40
    $region39: #{stem_forward.2} parent=5 // pred_region
      %s451 = ssub.s32 %s9, 2
      // Predicated region
      $region41: #{stem_forward.2} parent=39 // pred_check
        %p452 = pneg %p122
      $region42: #{stem_forward.2} parent=39 // pred_check_branch
        %454 = sbr.rel (%p452) target = $region44
      $region43: #{stem_forward.2} parent=39 // pred_region
        %p455 = scmp.lt.s32.totalorder %s20, 1
        %s456 = scalar_select %p455, %s20, 1
        %p457 = scmp.lt.s32.totalorder %s21, 0
        %s458 = scalar_select %p457, %s21, 0
        %s459 = smul.addr %s456, 8
        %s460 = sadd.s32 %s458, %s459
        %s461 = smul.addr %s460, 8
        %s462 = scalar_lea.vmem %s3, %s461
      $region44: #{stem_forward.2} parent=39 // pred_fallthru
        _
    $region40: #{stem_forward.2} parent=5 // pred_fallthru
      _
  $region6: #{stem_forward.2} parent=0 // loop_footer
    %s13 = sadd.s32 1, %s9
  $region7: #{stem_forward.2} parent=0 // loop_footer_branch
    %8 = sbr.rel target = $region3
  $region8: #{stem_forward.2} parent=0 // loop_exit
    _

// kernel: stem_forward.3
$region0: #{stem_forward.3}
  #allocation0 [shape = 'u32[]', space=smem, size = 0x4, offset = 0x4, fixed_abs, tag = 'smem constant byte address 0x4 - core index']
  #allocation1 [shape = 'u32[144,128]{1,0:T(1,128)}', space=vmem, size = 0x12000, scoped, tag = 'internal scratch']
  %s0 = inlined_call_operand.vmem [shape: f32[2,64,10,10], index: 0, kind: input, shape index: {}]
  %s1 = inlined_call_operand.vmem [shape: f32[2,64,8,8], index: 1, kind: output, shape index: {}]
  %s2 = sld [smem:[#allocation0]]
  $region37: #{stem_forward.3} parent=0
    _
  %s4 = ssub.s32 1, %s2
  %s5 = scalar_select 0, %s4, %s2
  loop: start=0, step=1, limit=4
  $region2: #{stem_forward.3} parent=0 // loop_pre_header
    _
  $region3: #{stem_forward.3} parent=0 // loop_header
    %s7 = sphi 0, %s11
    %p8 = scmp.ge.s32.totalorder %s7, 4
    %s17 = sphi 0, %s19
    %s20 = sphi 0, %s17
    %s21 = sphi 0, %s20
    %s37 = sphi 0, %s21
    %s43 = sphi 0, %s45
    %s46 = sphi 0, %s43
    %s47 = sphi 0, %s46
    %s63 = sphi 0, %s47
  $region4: #{stem_forward.3} parent=0 // loop_header_branch
    %10 = sbr.rel (%p8) target = $region8
  $region5: #{stem_forward.3} parent=0 // loop_body
    %s12 = ssub.s32 %s7, 1
    %s13 = ssub.s32 %s7, 2
    %s14 = sadd.s32 %s7, 1
    %s15 = ssub.s32 %s7, %s14
    %p16 = scmp.eq.s32.totalorder %s15, 0
    %s18 = sadd.s32 %s17, 1
    %s19 = scalar_select %p16, %s17, %s18
    %p22 = pneg %p16
    %p23 = scmp.eq.s32.totalorder %s7, 1
    %p24 = por %p22, %p23
    %p25 = scmp.ne.s32.totalorder %s17, %s20
    %p26 = scmp.eq.s32.totalorder %s7, 0
    %p27 = por %p25, %p26
    %p28 = scmp.ne.s32.totalorder %s17, %s20
    %p29 = scmp.eq.s32.totalorder %s12, 1
    %p30 = por %p28, %p29
    %p31 = scmp.ne.s32.totalorder %s20, %s21
    %p32 = scmp.eq.s32.totalorder %s12, 0
    %p33 = por %p31, %p32
    %p34 = scmp.ne.s32.totalorder %s20, %s21
    %p35 = scmp.eq.s32.totalorder %s13, 1
    %p36 = por %p34, %p35
    %p38 = scmp.ne.s32.totalorder %s21, %s37
    %p39 = scmp.eq.s32.totalorder %s13, 0
    %p40 = por %p38, %p39
    %s41 = ssub.s32 %s7, %s14
    %p42 = scmp.eq.s32.totalorder %s41, 0
    %s44 = sadd.s32 %s43, 1
    %s45 = scalar_select %p42, %s43, %s44
    %p48 = pneg %p42
    %p49 = scmp.eq.s32.totalorder %s7, 1
    %p50 = por %p48, %p49
    %p51 = scmp.ne.s32.totalorder %s43, %s46
    %p52 = scmp.eq.s32.totalorder %s7, 0
    %p53 = por %p51, %p52
    %p54 = scmp.ne.s32.totalorder %s43, %s46
    %p55 = scmp.eq.s32.totalorder %s12, 1
    %p56 = por %p54, %p55
    %p57 = scmp.ne.s32.totalorder %s46, %s47
    %p58 = scmp.eq.s32.totalorder %s12, 0
    %p59 = por %p57, %p58
    %p60 = scmp.ne.s32.totalorder %s46, %s47
    %p61 = scmp.eq.s32.totalorder %s13, 1
    %p62 = por %p60, %p61
    %p64 = scmp.ne.s32.totalorder %s47, %s63
    %p65 = scmp.eq.s32.totalorder %s13, 0
    %p66 = por %p64, %p65
    %p67 = scmp.le.s32.totalorder 1, %s7
    %p68 = scmp.lt.s32.totalorder %s7, 3
    %p69 = pnand %p67, %p68
    %p70 = pneg %p69
    // Predicated region
    $region9: #{stem_forward.3} parent=5 // pred_check
      _
    $region10: #{stem_forward.3} parent=5 // pred_check_branch
      %72 = sbr.rel (%p69) target = $region12
    $region11: #{stem_forward.3} parent=5 // pred_region
      %s73 = ssub.s32 %s7, 1
    $region12: #{stem_forward.3} parent=5 // pred_fallthru
      _
    %p74 = scmp.lt.s32.totalorder %s7, 2
    // Predicated region
    $region13: #{stem_forward.3} parent=5 // pred_check
      %p75 = pneg %p74
    $region14: #{stem_forward.3} parent=5 // pred_check_branch
      %77 = sbr.rel (%p75) target = $region16
    $region15: #{stem_forward.3} parent=5 // pred_region
      // Predicated region
      $region17: #{stem_forward.3} parent=15 // pred_check
        %p78 = pneg %p27
      $region18: #{stem_forward.3} parent=15 // pred_check_branch
        %80 = sbr.rel (%p78) target = $region20
      $region19: #{stem_forward.3} parent=15 // pred_region
        %p81 = scmp.lt.s32.totalorder %s7, 1
        %s82 = scalar_select %p81, %s7, 1
        %s83 = smul.addr %s82, 128
        %s84 = smul.addr %s83, 8
        %s85 = scalar_lea.vmem %s0, %s84
      $region20: #{stem_forward.3} parent=15 // pred_fallthru
        _
    $region16: #{stem_forward.3} parent=5 // pred_fallthru
      _
    %p86 = scmp.le.s32.totalorder 1, %s7
    %p87 = scmp.lt.s32.totalorder %s7, 3
    %p88 = pnand %p86, %p87
    %p89 = pneg %p88
    // Predicated region
    $region21: #{stem_forward.3} parent=5 // pred_check
      _
    $region22: #{stem_forward.3} parent=5 // pred_check_branch
      %91 = sbr.rel (%p88) target = $region24
    $region23: #{stem_forward.3} parent=5 // pred_region
      %s92 = ssub.s32 %s7, 1
      %p93 = scmp.lt.s32.totalorder %s12, 1
      %s94 = scalar_select %p93, %s12, 1
      %s95 = smul.addr %s94, 128
      %s96 = smul.addr %s95, 8
      %s97 = scalar_lea.vmem %s0, %s96
      %p98 = pneg %p33
      %p99 = pneg %p30
      %p100 = pneg %p59
      %p101 = pneg %p56
      %p102 = scmp.lt.s32.totalorder %s12, 1
      %s103 = scalar_select %p102, %s12, 1
      %s104 = smul.addr %s103, 64
      %s105 = smul.addr %s104, 8
      %s106 = scalar_lea.vmem %s1, %s105
      %p107 = scmp.lt.s32.totalorder %s12, 1
      %s108 = scalar_select %p107, %s12, 1
      %s109 = smul.addr %s108, 128
      %s110 = smul.addr %s109, 8
      %s111 = scalar_lea.vmem %s0, %s110
      %p112 = scmp.lt.s32.totalorder %s12, 1
      %s113 = scalar_select %p112, %s12, 1
      %s114 = smul.addr %s113, 64
      %s115 = smul.addr %s114, 8
      %s116 = scalar_lea.vmem %s1, %s115
      %v117 = vld [vmem:[%s111] sm:$0xff]
      %v118 = vld [vmem:[%s111 + $0x8] sm:$0x3]
      %v119 = vld [vmem:[%s111 + $0x10] sm:$0xff]
      %v120 = vld [vmem:[%s111 + $0x18] sm:$0x3]
      %v121 = vld [vmem:[%s111 + $0x20] sm:$0xff]
      %v122 = vld [vmem:[%s111 + $0x28] sm:$0x3]
      %v123 = vld [vmem:[%s111 + $0x30] sm:$0xff]
      %v124 = vld [vmem:[%s111 + $0x38] sm:$0x3]
      %v125 = vld [vmem:[%s111 + $0x40] sm:$0xff]
      %v126 = vld [vmem:[%s111 + $0x48] sm:$0x3]
      %v127 = vld [vmem:[%s111 + $0x50] sm:$0xff]
      %v128 = vld [vmem:[%s111 + $0x58] sm:$0x3]
      %v129 = vld [vmem:[%s111 + $0x60] sm:$0xff]
      %v130 = vld [vmem:[%s111 + $0x68] sm:$0x3]
      %v131 = vld [vmem:[%s111 + $0x70] sm:$0xff]
      %v132 = vld [vmem:[%s111 + $0x78] sm:$0x3]
      %v133 = vld [vmem:[%s111 + $0x80] sm:$0xff]
      %v134 = vld [vmem:[%s111 + $0x88] sm:$0x3]
      %v135 = vld [vmem:[%s111 + $0x90] sm:$0xff]
      %v136 = vld [vmem:[%s111 + $0x98] sm:$0x3]
      %v137 = vld [vmem:[%s111 + $0xa0] sm:$0xff]
      %v138 = vld [vmem:[%s111 + $0xa8] sm:$0x3]
      %v139 = vld [vmem:[%s111 + $0xb0] sm:$0xff]
      %v140 = vld [vmem:[%s111 + $0xb8] sm:$0x3]
      %v141 = vld [vmem:[%s111 + $0xc0] sm:$0xff]
      %v142 = vld [vmem:[%s111 + $0xc8] sm:$0x3]
      %v143 = vld [vmem:[%s111 + $0xd0] sm:$0xff]
      %v144 = vld [vmem:[%s111 + $0xd8] sm:$0x3]
      %v145 = vld [vmem:[%s111 + $0xe0] sm:$0xff]
      %v146 = vld [vmem:[%s111 + $0xe8] sm:$0x3]
      %v147 = vld [vmem:[%s111 + $0xf0] sm:$0xff]
      %v148 = vld [vmem:[%s111 + $0xf8] sm:$0x3]
      %v149 = vld [vmem:[%s111 + $0x100] sm:$0xff]
      %v150 = vld [vmem:[%s111 + $0x108] sm:$0x3]
      %v151 = vld [vmem:[%s111 + $0x110] sm:$0xff]
      %v152 = vld [vmem:[%s111 + $0x118] sm:$0x3]
      %v153 = vld [vmem:[%s111 + $0x120] sm:$0xff]
      %v154 = vld [vmem:[%s111 + $0x128] sm:$0x3]
      %v155 = vld [vmem:[%s111 + $0x130] sm:$0xff]
      %v156 = vld [vmem:[%s111 + $0x138] sm:$0x3]
      %v157 = vld [vmem:[%s111 + $0x140] sm:$0xff]
      %v158 = vld [vmem:[%s111 + $0x148] sm:$0x3]
      %v159 = vld [vmem:[%s111 + $0x150] sm:$0xff]
      %v160 = vld [vmem:[%s111 + $0x158] sm:$0x3]
      %v161 = vld [vmem:[%s111 + $0x160] sm:$0xff]
      %v162 = vld [vmem:[%s111 + $0x168] sm:$0x3]
      %v163 = vld [vmem:[%s111 + $0x170] sm:$0xff]
      %v164 = vld [vmem:[%s111 + $0x178] sm:$0x3]
      %v165 = vld [vmem:[%s111 + $0x180] sm:$0xff]
      %v166 = vld [vmem:[%s111 + $0x188] sm:$0x3]
      %v167 = vld [vmem:[%s111 + $0x190] sm:$0xff]
      %v168 = vld [vmem:[%s111 + $0x198] sm:$0x3]
      %v169 = vld [vmem:[%s111 + $0x1a0] sm:$0xff]
      %v170 = vld [vmem:[%s111 + $0x1a8] sm:$0x3]
      %v171 = vld [vmem:[%s111 + $0x1b0] sm:$0xff]
      %v172 = vld [vmem:[%s111 + $0x1b8] sm:$0x3]
      %v173 = vld [vmem:[%s111 + $0x1c0] sm:$0xff]
      %v174 = vld [vmem:[%s111 + $0x1c8] sm:$0x3]
      %v175 = vld [vmem:[%s111 + $0x1d0] sm:$0xff]
      %v176 = vld [vmem:[%s111 + $0x1d8] sm:$0x3]
      %v177 = vld [vmem:[%s111 + $0x1e0] sm:$0xff]
      %v178 = vld [vmem:[%s111 + $0x1e8] sm:$0x3]
      %v179 = vld [vmem:[%s111 + $0x1f0] sm:$0xff]
      %v180 = vld [vmem:[%s111 + $0x1f8] sm:$0x3]
      %v181 = vld [vmem:[%s111 + $0x200] sm:$0xff]
      %v182 = vld [vmem:[%s111 + $0x208] sm:$0x3]
      %v183 = vld [vmem:[%s111 + $0x210] sm:$0xff]
      %v184 = vld [vmem:[%s111 + $0x218] sm:$0x3]
      %v185 = vld [vmem:[%s111 + $0x220] sm:$0xff]
      %v186 = vld [vmem:[%s111 + $0x228] sm:$0x3]
      %v187 = vld [vmem:[%s111 + $0x230] sm:$0xff]
      %v188 = vld [vmem:[%s111 + $0x238] sm:$0x3]
      %v189 = vld [vmem:[%s111 + $0x240] sm:$0xff]
      %v190 = vld [vmem:[%s111 + $0x248] sm:$0x3]
      %v191 = vld [vmem:[%s111 + $0x250] sm:$0xff]
      %v192 = vld [vmem:[%s111 + $0x258] sm:$0x3]
      %v193 = vld [vmem:[%s111 + $0x260] sm:$0xff]
      %v194 = vld [vmem:[%s111 + $0x268] sm:$0x3]
      %v195 = vld [vmem:[%s111 + $0x270] sm:$0xff]
      %v196 = vld [vmem:[%s111 + $0x278] sm:$0x3]
      %v197 = vld [vmem:[%s111 + $0x280] sm:$0xff]
      %v198 = vld [vmem:[%s111 + $0x288] sm:$0x3]
      %v199 = vld [vmem:[%s111 + $0x290] sm:$0xff]
      %v200 = vld [vmem:[%s111 + $0x298] sm:$0x3]
      %v201 = vld [vmem:[%s111 + $0x2a0] sm:$0xff]
      %v202 = vld [vmem:[%s111 + $0x2a8] sm:$0x3]
      %v203 = vld [vmem:[%s111 + $0x2b0] sm:$0xff]
      %v204 = vld [vmem:[%s111 + $0x2b8] sm:$0x3]
      %v205 = vld [vmem:[%s111 + $0x2c0] sm:$0xff]
      %v206 = vld [vmem:[%s111 + $0x2c8] sm:$0x3]
      %v207 = vld [vmem:[%s111 + $0x2d0] sm:$0xff]
      %v208 = vld [vmem:[%s111 + $0x2d8] sm:$0x3]
      %v209 = vld [vmem:[%s111 + $0x2e0] sm:$0xff]
      %v210 = vld [vmem:[%s111 + $0x2e8] sm:$0x3]
      %v211 = vld [vmem:[%s111 + $0x2f0] sm:$0xff]
      %v212 = vld [vmem:[%s111 + $0x2f8] sm:$0x3]
      %v213 = vld [vmem:[%s111 + $0x300] sm:$0xff]
      %v214 = vld [vmem:[%s111 + $0x308] sm:$0x3]
      %v215 = vld [vmem:[%s111 + $0x310] sm:$0xff]
      %v216 = vld [vmem:[%s111 + $0x318] sm:$0x3]
      %v217 = vld [vmem:[%s111 + $0x320] sm:$0xff]
      %v218 = vld [vmem:[%s111 + $0x328] sm:$0x3]
      %v219 = vld [vmem:[%s111 + $0x330] sm:$0xff]
      %v220 = vld [vmem:[%s111 + $0x338] sm:$0x3]
      %v221 = vld [vmem:[%s111 + $0x340] sm:$0xff]
      %v222 = vld [vmem:[%s111 + $0x348] sm:$0x3]
      %v223 = vld [vmem:[%s111 + $0x350] sm:$0xff]
      %v224 = vld [vmem:[%s111 + $0x358] sm:$0x3]
      %v225 = vld [vmem:[%s111 + $0x360] sm:$0xff]
      %v226 = vld [vmem:[%s111 + $0x368] sm:$0x3]
      %v227 = vld [vmem:[%s111 + $0x370] sm:$0xff]
      %v228 = vld [vmem:[%s111 + $0x378] sm:$0x3]
      %v229 = vld [vmem:[%s111 + $0x380] sm:$0xff]
      %v230 = vld [vmem:[%s111 + $0x388] sm:$0x3]
      %v231 = vld [vmem:[%s111 + $0x390] sm:$0xff]
      %v232 = vld [vmem:[%s111 + $0x398] sm:$0x3]
      %v233 = vld [vmem:[%s111 + $0x3a0] sm:$0xff]
      %v234 = vld [vmem:[%s111 + $0x3a8] sm:$0x3]
      %v235 = vld [vmem:[%s111 + $0x3b0] sm:$0xff]
      %v236 = vld [vmem:[%s111 + $0x3b8] sm:$0x3]
      %v237 = vld [vmem:[%s111 + $0x3c0] sm:$0xff]
      %v238 = vld [vmem:[%s111 + $0x3c8] sm:$0x3]
      %v239 = vld [vmem:[%s111 + $0x3d0] sm:$0xff]
      %v240 = vld [vmem:[%s111 + $0x3d8] sm:$0x3]
      %v241 = vld [vmem:[%s111 + $0x3e0] sm:$0xff]
      %v242 = vld [vmem:[%s111 + $0x3e8] sm:$0x3]
      %v243 = vld [vmem:[%s111 + $0x3f0] sm:$0xff]
      %v244 = vld [vmem:[%s111 + $0x3f8] sm:$0x3]
      %309 = vrot.lane.b32.xlu0 %v117, 127
      %v310 = vpop.permute.xlu0 %309
      %311 = vrot.lane.b32.xlu0 %v119, 127
      %v312 = vpop.permute.xlu0 %311
      %313 = vrot.lane.b32.xlu0 %v121, 127
      %v314 = vpop.permute.xlu0 %313
      %315 = vrot.lane.b32.xlu0 %v123, 127
      %v316 = vpop.permute.xlu0 %315
      %317 = vrot.lane.b32.xlu0 %v125, 127
      %v318 = vpop.permute.xlu0 %317
      %319 = vrot.lane.b32.xlu0 %v127, 127
      %v320 = vpop.permute.xlu0 %319
      %321 = vrot.lane.b32.xlu0 %v129, 127
      %v322 = vpop.permute.xlu0 %321
      %323 = vrot.lane.b32.xlu0 %v131, 127
      %v324 = vpop.permute.xlu0 %323
      %325 = vrot.lane.b32.xlu0 %v133, 127
      %v326 = vpop.permute.xlu0 %325
      %327 = vrot.lane.b32.xlu0 %v135, 127
      %v328 = vpop.permute.xlu0 %327
      %329 = vrot.lane.b32.xlu0 %v137, 127
      %v330 = vpop.permute.xlu0 %329
      %331 = vrot.lane.b32.xlu0 %v139, 127
      %v332 = vpop.permute.xlu0 %331
      %333 = vrot.lane.b32.xlu0 %v141, 127
      %v334 = vpop.permute.xlu0 %333
      %335 = vrot.lane.b32.xlu0 %v143, 127
      %v336 = vpop.permute.xlu0 %335
      %337 = vrot.lane.b32.xlu0 %v145, 127
      %v338 = vpop.permute.xlu0 %337
      %339 = vrot.lane.b32.xlu0 %v147, 127
      %v340 = vpop.permute.xlu0 %339
      %341 = vrot.lane.b32.xlu0 %v149, 127
      %v342 = vpop.permute.xlu0 %341
      %343 = vrot.lane.b32.xlu0 %v151, 127
      %v344 = vpop.permute.xlu0 %343
      %345 = vrot.lane.b32.xlu0 %v153, 127
      %v346 = vpop.permute.xlu0 %345
      %347 = vrot.lane.b32.xlu0 %v155, 127
      %v348 = vpop.permute.xlu0 %347
      %349 = vrot.lane.b32.xlu0 %v157, 127
      %v350 = vpop.permute.xlu0 %349
      %351 = vrot.lane.b32.xlu0 %v159, 127
      %v352 = vpop.permute.xlu0 %351
      %353 = vrot.lane.b32.xlu0 %v161, 127
      %v354 = vpop.permute.xlu0 %353
      %355 = vrot.lane.b32.xlu0 %v163, 127
      %v356 = vpop.permute.xlu0 %355
      %357 = vrot.lane.b32.xlu0 %v165, 127
      %v358 = vpop.permute.xlu0 %357
      %359 = vrot.lane.b32.xlu0 %v167, 127
      %v360 = vpop.permute.xlu0 %359
      %361 = vrot.lane.b32.xlu0 %v169, 127
      %v362 = vpop.permute.xlu0 %361
      %363 = vrot.lane.b32.xlu0 %v171, 127
      %v364 = vpop.permute.xlu0 %363
      %365 = vrot.lane.b32.xlu0 %v173, 127
      %v366 = vpop.permute.xlu0 %365
      %367 = vrot.lane.b32.xlu0 %v175, 127
      %v368 = vpop.permute.xlu0 %367
      %369 = vrot.lane.b32.xlu0 %v177, 127
      %v370 = vpop.permute.xlu0 %369
      %371 = vrot.lane.b32.xlu0 %v179, 127
      %v372 = vpop.permute.xlu0 %371
      %373 = vrot.lane.b32.xlu0 %v181, 127
      %v374 = vpop.permute.xlu0 %373
      %375 = vrot.lane.b32.xlu0 %v183, 127
      %v376 = vpop.permute.xlu0 %375
      %377 = vrot.lane.b32.xlu0 %v185, 127
      %v378 = vpop.permute.xlu0 %377
      %379 = vrot.lane.b32.xlu0 %v187, 127
      %v380 = vpop.permute.xlu0 %379
      %381 = vrot.lane.b32.xlu0 %v189, 127
      %v382 = vpop.permute.xlu0 %381
      %383 = vrot.lane.b32.xlu0 %v191, 127
      %v384 = vpop.permute.xlu0 %383
      %385 = vrot.lane.b32.xlu0 %v193, 127
      %v386 = vpop.permute.xlu0 %385
      %387 = vrot.lane.b32.xlu0 %v195, 127
      %v388 = vpop.permute.xlu0 %387
      %389 = vrot.lane.b32.xlu0 %v197, 127
      %v390 = vpop.permute.xlu0 %389
      %391 = vrot.lane.b32.xlu0 %v199, 127
      %v392 = vpop.permute.xlu0 %391
      %393 = vrot.lane.b32.xlu0 %v201, 127
      %v394 = vpop.permute.xlu0 %393
      %395 = vrot.lane.b32.xlu0 %v203, 127
      %v396 = vpop.permute.xlu0 %395
      %397 = vrot.lane.b32.xlu0 %v205, 127
      %v398 = vpop.permute.xlu0 %397
      %399 = vrot.lane.b32.xlu0 %v207, 127
      %v400 = vpop.permute.xlu0 %399
      %401 = vrot.lane.b32.xlu0 %v209, 127
      %v402 = vpop.permute.xlu0 %401
      %403 = vrot.lane.b32.xlu0 %v211, 127
      %v404 = vpop.permute.xlu0 %403
      %405 = vrot.lane.b32.xlu0 %v213, 127
      %v406 = vpop.permute.xlu0 %405
      %407 = vrot.lane.b32.xlu0 %v215, 127
      %v408 = vpop.permute.xlu0 %407
      %409 = vrot.lane.b32.xlu0 %v217, 127
      %v410 = vpop.permute.xlu0 %409
      %411 = vrot.lane.b32.xlu0 %v219, 127
      %v412 = vpop.permute.xlu0 %411
      %413 = vrot.lane.b32.xlu0 %v221, 127
      %v414 = vpop.permute.xlu0 %413
      %415 = vrot.lane.b32.xlu0 %v223, 127
      %v416 = vpop.permute.xlu0 %415
      %417 = vrot.lane.b32.xlu0 %v225, 127
      %v418 = vpop.permute.xlu0 %417
      %419 = vrot.lane.b32.xlu0 %v227, 127
      %v420 = vpop.permute.xlu0 %419
      %421 = vrot.lane.b32.xlu0 %v229, 127
      %v422 = vpop.permute.xlu0 %421
      %423 = vrot.lane.b32.xlu0 %v231, 127
      %v424 = vpop.permute.xlu0 %423
      %425 = vrot.lane.b32.xlu0 %v233, 127
      %v426 = vpop.permute.xlu0 %425
      %427 = vrot.lane.b32.xlu0 %v235, 127
      %v428 = vpop.permute.xlu0 %427
      %429 = vrot.lane.b32.xlu0 %v237, 127
      %v430 = vpop.permute.xlu0 %429
      %431 = vrot.lane.b32.xlu0 %v239, 127
      %v432 = vpop.permute.xlu0 %431
      %433 = vrot.lane.b32.xlu0 %v241, 127
      %v434 = vpop.permute.xlu0 %433
      %435 = vrot.lane.b32.xlu0 %v243, 127
      %v436 = vpop.permute.xlu0 %435
      %v501 = vmax.f32 %v117, %v310
      %v502 = vmax.f32 %v119, %v312
      %v503 = vmax.f32 %v121, %v314
      %v504 = vmax.f32 %v123, %v316
      %v505 = vmax.f32 %v125, %v318
      %v506 = vmax.f32 %v127, %v320
      %v507 = vmax.f32 %v129, %v322
      %v508 = vmax.f32 %v131, %v324
      %v509 = vmax.f32 %v133, %v326
      %v510 = vmax.f32 %v135, %v328
      %v511 = vmax.f32 %v137, %v330
      %v512 = vmax.f32 %v139, %v332
      %v513 = vmax.f32 %v141, %v334
      %v514 = vmax.f32 %v143, %v336
      %v515 = vmax.f32 %v145, %v338
      %v516 = vmax.f32 %v147, %v340
      %v517 = vmax.f32 %v149, %v342
      %v518 = vmax.f32 %v151, %v344
      %v519 = vmax.f32 %v153, %v346
      %v520 = vmax.f32 %v155, %v348
      %v521 = vmax.f32 %v157, %v350
      %v522 = vmax.f32 %v159, %v352
      %v523 = vmax.f32 %v161, %v354
      %v524 = vmax.f32 %v163, %v356
      %v525 = vmax.f32 %v165, %v358
      %v526 = vmax.f32 %v167, %v360
      %v527 = vmax.f32 %v169, %v362
      %v528 = vmax.f32 %v171, %v364
      %v529 = vmax.f32 %v173, %v366
      %v530 = vmax.f32 %v175, %v368
      %v531 = vmax.f32 %v177, %v370
      %v532 = vmax.f32 %v179, %v372
      %v533 = vmax.f32 %v181, %v374
      %v534 = vmax.f32 %v183, %v376
      %v535 = vmax.f32 %v185, %v378
      %v536 = vmax.f32 %v187, %v380
      %v537 = vmax.f32 %v189, %v382
      %v538 = vmax.f32 %v191, %v384
      %v539 = vmax.f32 %v193, %v386
      %v540 = vmax.f32 %v195, %v388
      %v541 = vmax.f32 %v197, %v390
      %v542 = vmax.f32 %v199, %v392
      %v543 = vmax.f32 %v201, %v394
      %v544 = vmax.f32 %v203, %v396
      %v545 = vmax.f32 %v205, %v398
      %v546 = vmax.f32 %v207, %v400
      %v547 = vmax.f32 %v209, %v402
      %v548 = vmax.f32 %v211, %v404
      %v549 = vmax.f32 %v213, %v406
      %v550 = vmax.f32 %v215, %v408
      %v551 = vmax.f32 %v217, %v410
      %v552 = vmax.f32 %v219, %v412
      %v553 = vmax.f32 %v221, %v414
      %v554 = vmax.f32 %v223, %v416
      %v555 = vmax.f32 %v225, %v418
      %v556 = vmax.f32 %v227, %v420
      %v557 = vmax.f32 %v229, %v422
      %v558 = vmax.f32 %v231, %v424
      %v559 = vmax.f32 %v233, %v426
      %v560 = vmax.f32 %v235, %v428
      %v561 = vmax.f32 %v237, %v430
      %v562 = vmax.f32 %v239, %v432
      %v563 = vmax.f32 %v241, %v434
      %v564 = vmax.f32 %v243, %v436
      %565 = vrot.lane.b32.xlu0 %v117, 126
      %v566 = vpop.permute.xlu0 %565
      %567 = vrot.lane.b32.xlu0 %v119, 126
      %v568 = vpop.permute.xlu0 %567
      %569 = vrot.lane.b32.xlu0 %v121, 126
      %v570 = vpop.permute.xlu0 %569
      %571 = vrot.lane.b32.xlu0 %v123, 126
      %v572 = vpop.permute.xlu0 %571
      %573 = vrot.lane.b32.xlu0 %v125, 126
      %v574 = vpop.permute.xlu0 %573
      %575 = vrot.lane.b32.xlu0 %v127, 126
      %v576 = vpop.permute.xlu0 %575
      %577 = vrot.lane.b32.xlu0 %v129, 126
      %v578 = vpop.permute.xlu0 %577
      %579 = vrot.lane.b32.xlu0 %v131, 126
      %v580 = vpop.permute.xlu0 %579
      %581 = vrot.lane.b32.xlu0 %v133, 126
      %v582 = vpop.permute.xlu0 %581
      %583 = vrot.lane.b32.xlu0 %v135, 126
      %v584 = vpop.permute.xlu0 %583
      %585 = vrot.lane.b32.xlu0 %v137, 126
      %v586 = vpop.permute.xlu0 %585
      %587 = vrot.lane.b32.xlu0 %v139, 126
      %v588 = vpop.permute.xlu0 %587
      %589 = vrot.lane.b32.xlu0 %v141, 126
      %v590 = vpop.permute.xlu0 %589
      %591 = vrot.lane.b32.xlu0 %v143, 126
      %v592 = vpop.permute.xlu0 %591
      %593 = vrot.lane.b32.xlu0 %v145, 126
      %v594 = vpop.permute.xlu0 %593
      %595 = vrot.lane.b32.xlu0 %v147, 126
      %v596 = vpop.permute.xlu0 %595
      %597 = vrot.lane.b32.xlu0 %v149, 126
      %v598 = vpop.permute.xlu0 %597
      %599 = vrot.lane.b32.xlu0 %v151, 126
      %v600 = vpop.permute.xlu0 %599
      %601 = vrot.lane.b32.xlu0 %v153, 126
      %v602 = vpop.permute.xlu0 %601
      %603 = vrot.lane.b32.xlu0 %v155, 126
      %v604 = vpop.permute.xlu0 %603
      %605 = vrot.lane.b32.xlu0 %v157, 126
      %v606 = vpop.permute.xlu0 %605
      %607 = vrot.lane.b32.xlu0 %v159, 126
      %v608 = vpop.permute.xlu0 %607
      %609 = vrot.lane.b32.xlu0 %v161, 126
      %v610 = vpop.permute.xlu0 %609
      %611 = vrot.lane.b32.xlu0 %v163, 126
      %v612 = vpop.permute.xlu0 %611
      %613 = vrot.lane.b32.xlu0 %v165, 126
      %v614 = vpop.permute.xlu0 %613
      %615 = vrot.lane.b32.xlu0 %v167, 126
      %v616 = vpop.permute.xlu0 %615
      %617 = vrot.lane.b32.xlu0 %v169, 126
      %v618 = vpop.permute.xlu0 %617
      %619 = vrot.lane.b32.xlu0 %v171, 126
      %v620 = vpop.permute.xlu0 %619
      %621 = vrot.lane.b32.xlu0 %v173, 126
      %v622 = vpop.permute.xlu0 %621
      %623 = vrot.lane.b32.xlu0 %v175, 126
      %v624 = vpop.permute.xlu0 %623
      %625 = vrot.lane.b32.xlu0 %v177, 126
      %v626 = vpop.permute.xlu0 %625
      %627 = vrot.lane.b32.xlu0 %v179, 126
      %v628 = vpop.permute.xlu0 %627
      %629 = vrot.lane.b32.xlu0 %v181, 126
      %v630 = vpop.permute.xlu0 %629
      %631 = vrot.lane.b32.xlu0 %v183, 126
      %v632 = vpop.permute.xlu0 %631
      %633 = vrot.lane.b32.xlu0 %v185, 126
      %v634 = vpop.permute.xlu0 %633
      %635 = vrot.lane.b32.xlu0 %v187, 126
      %v636 = vpop.permute.xlu0 %635
      %637 = vrot.lane.b32.xlu0 %v189, 126
      %v638 = vpop.permute.xlu0 %637
      %639 = vrot.lane.b32.xlu0 %v191, 126
      %v640 = vpop.permute.xlu0 %639
      %641 = vrot.lane.b32.xlu0 %v193, 126
      %v642 = vpop.permute.xlu0 %641
      %643 = vrot.lane.b32.xlu0 %v195, 126
      %v644 = vpop.permute.xlu0 %643
      %645 = vrot.lane.b32.xlu0 %v197, 126
      %v646 = vpop.permute.xlu0 %645
      %647 = vrot.lane.b32.xlu0 %v199, 126
      %v648 = vpop.permute.xlu0 %647
      %649 = vrot.lane.b32.xlu0 %v201, 126
      %v650 = vpop.permute.xlu0 %649
      %651 = vrot.lane.b32.xlu0 %v203, 126
      %v652 = vpop.permute.xlu0 %651
      %653 = vrot.lane.b32.xlu0 %v205, 126
      %v654 = vpop.permute.xlu0 %653
      %655 = vrot.lane.b32.xlu0 %v207, 126
      %v656 = vpop.permute.xlu0 %655
      %657 = vrot.lane.b32.xlu0 %v209, 126
      %v658 = vpop.permute.xlu0 %657
      %659 = vrot.lane.b32.xlu0 %v211, 126
      %v660 = vpop.permute.xlu0 %659
      %661 = vrot.lane.b32.xlu0 %v213, 126
      %v662 = vpop.permute.xlu0 %661
      %663 = vrot.lane.b32.xlu0 %v215, 126
      %v664 = vpop.permute.xlu0 %663
      %665 = vrot.lane.b32.xlu0 %v217, 126
      %v666 = vpop.permute.xlu0 %665
      %667 = vrot.lane.b32.xlu0 %v219, 126
      %v668 = vpop.permute.xlu0 %667
      %669 = vrot.lane.b32.xlu0 %v221, 126
      %v670 = vpop.permute.xlu0 %669
      %671 = vrot.lane.b32.xlu0 %v223, 126
      %v672 = vpop.permute.xlu0 %671
      %673 = vrot.lane.b32.xlu0 %v225, 126
      %v674 = vpop.permute.xlu0 %673
      %675 = vrot.lane.b32.xlu0 %v227, 126
      %v676 = vpop.permute.xlu0 %675
      %677 = vrot.lane.b32.xlu0 %v229, 126
      %v678 = vpop.permute.xlu0 %677
      %679 = vrot.lane.b32.xlu0 %v231, 126
      %v680 = vpop.permute.xlu0 %679
      %681 = vrot.lane.b32.xlu0 %v233, 126
      %v682 = vpop.permute.xlu0 %681
      %683 = vrot.lane.b32.xlu0 %v235, 126
      %v684 = vpop.permute.xlu0 %683
      %685 = vrot.lane.b32.xlu0 %v237, 126
      %v686 = vpop.permute.xlu0 %685
      %687 = vrot.lane.b32.xlu0 %v239, 126
      %v688 = vpop.permute.xlu0 %687
      %689 = vrot.lane.b32.xlu0 %v241, 126
      %v690 = vpop.permute.xlu0 %689
      %691 = vrot.lane.b32.xlu0 %v243, 126
      %v692 = vpop.permute.xlu0 %691
      %v757 = vmax.f32 %v501, %v566
      %v758 = vmax.f32 %v502, %v568
      %v759 = vmax.f32 %v503, %v570
      %v760 = vmax.f32 %v504, %v572
      %v761 = vmax.f32 %v505, %v574
      %v762 = vmax.f32 %v506, %v576
      %v763 = vmax.f32 %v507, %v578
      %v764 = vmax.f32 %v508, %v580
      %v765 = vmax.f32 %v509, %v582
      %v766 = vmax.f32 %v510, %v584
      %v767 = vmax.f32 %v511, %v586
      %v768 = vmax.f32 %v512, %v588
      %v769 = vmax.f32 %v513, %v590
      %v770 = vmax.f32 %v514, %v592
      %v771 = vmax.f32 %v515, %v594
      %v772 = vmax.f32 %v516, %v596
      %v773 = vmax.f32 %v517, %v598
      %v774 = vmax.f32 %v518, %v600
      %v775 = vmax.f32 %v519, %v602
      %v776 = vmax.f32 %v520, %v604
      %v777 = vmax.f32 %v521, %v606
      %v778 = vmax.f32 %v522, %v608
      %v779 = vmax.f32 %v523, %v610
      %v780 = vmax.f32 %v524, %v612
      %v781 = vmax.f32 %v525, %v614
      %v782 = vmax.f32 %v526, %v616
      %v783 = vmax.f32 %v527, %v618
      %v784 = vmax.f32 %v528, %v620
      %v785 = vmax.f32 %v529, %v622
      %v786 = vmax.f32 %v530, %v624
      %v787 = vmax.f32 %v531, %v626
      %v788 = vmax.f32 %v532, %v628
      %v789 = vmax.f32 %v533, %v630
      %v790 = vmax.f32 %v534, %v632
      %v791 = vmax.f32 %v535, %v634
      %v792 = vmax.f32 %v536, %v636
      %v793 = vmax.f32 %v537, %v638
      %v794 = vmax.f32 %v538, %v640
      %v795 = vmax.f32 %v539, %v642
      %v796 = vmax.f32 %v540, %v644
      %v797 = vmax.f32 %v541, %v646
      %v798 = vmax.f32 %v542, %v648
      %v799 = vmax.f32 %v543, %v650
      %v800 = vmax.f32 %v544, %v652
      %v801 = vmax.f32 %v545, %v654
      %v802 = vmax.f32 %v546, %v656
      %v803 = vmax.f32 %v547, %v658
      %v804 = vmax.f32 %v548, %v660
      %v805 = vmax.f32 %v549, %v662
      %v806 = vmax.f32 %v550, %v664
      %v807 = vmax.f32 %v551, %v666
      %v808 = vmax.f32 %v552, %v668
      %v809 = vmax.f32 %v553, %v670
      %v810 = vmax.f32 %v554, %v672
      %v811 = vmax.f32 %v555, %v674
      %v812 = vmax.f32 %v556, %v676
      %v813 = vmax.f32 %v557, %v678
      %v814 = vmax.f32 %v558, %v680
      %v815 = vmax.f32 %v559, %v682
      %v816 = vmax.f32 %v560, %v684
      %v817 = vmax.f32 %v561, %v686
      %v818 = vmax.f32 %v562, %v688
      %v819 = vmax.f32 %v563, %v690
      %v820 = vmax.f32 %v564, %v692
      %vm885 = vcmask 1046528
      %v886 = vrot.slane %v117, 1
      %v887 = vrot.slane %v118, 1
      %v888 = vsel %vm885, %v886, %v887
      %v889 = vrot.slane %v119, 1
      %v890 = vrot.slane %v120, 1
      %v891 = vsel %vm885, %v889, %v890
      %v892 = vrot.slane %v121, 1
      %v893 = vrot.slane %v122, 1
      %v894 = vsel %vm885, %v892, %v893
      %v895 = vrot.slane %v123, 1
      %v896 = vrot.slane %v124, 1
      %v897 = vsel %vm885, %v895, %v896
      %v898 = vrot.slane %v125, 1
      %v899 = vrot.slane %v126, 1
      %v900 = vsel %vm885, %v898, %v899
      %v901 = vrot.slane %v127, 1
      %v902 = vrot.slane %v128, 1
      %v903 = vsel %vm885, %v901, %v902
      %v904 = vrot.slane %v129, 1
      %v905 = vrot.slane %v130, 1
      %v906 = vsel %vm885, %v904, %v905
      %v907 = vrot.slane %v131, 1
      %v908 = vrot.slane %v132, 1
      %v909 = vsel %vm885, %v907, %v908
      %v910 = vrot.slane %v133, 1
      %v911 = vrot.slane %v134, 1
      %v912 = vsel %vm885, %v910, %v911
      %v913 = vrot.slane %v135, 1
      %v914 = vrot.slane %v136, 1
      %v915 = vsel %vm885, %v913, %v914
      %v916 = vrot.slane %v137, 1
      %v917 = vrot.slane %v138, 1
      %v918 = vsel %vm885, %v916, %v917
      %v919 = vrot.slane %v139, 1
      %v920 = vrot.slane %v140, 1
      %v921 = vsel %vm885, %v919, %v920
      %v922 = vrot.slane %v141, 1
      %v923 = vrot.slane %v142, 1
      %v924 = vsel %vm885, %v922, %v923
      %v925 = vrot.slane %v143, 1
      %v926 = vrot.slane %v144, 1
      %v927 = vsel %vm885, %v925, %v926
      %v928 = vrot.slane %v145, 1
      %v929 = vrot.slane %v146, 1
      %v930 = vsel %vm885, %v928, %v929
      %v931 = vrot.slane %v147, 1
      %v932 = vrot.slane %v148, 1
      %v933 = vsel %vm885, %v931, %v932
      %v934 = vrot.slane %v149, 1
      %v935 = vrot.slane %v150, 1
      %v936 = vsel %vm885, %v934, %v935
      %v937 = vrot.slane %v151, 1
      %v938 = vrot.slane %v152, 1
      %v939 = vsel %vm885, %v937, %v938
      %v940 = vrot.slane %v153, 1
      %v941 = vrot.slane %v154, 1
      %v942 = vsel %vm885, %v940, %v941
      %v943 = vrot.slane %v155, 1
      %v944 = vrot.slane %v156, 1
      %v945 = vsel %vm885, %v943, %v944
      %v946 = vrot.slane %v157, 1
      %v947 = vrot.slane %v158, 1
      %v948 = vsel %vm885, %v946, %v947
      %v949 = vrot.slane %v159, 1
      %v950 = vrot.slane %v160, 1
      %v951 = vsel %vm885, %v949, %v950
      %v952 = vrot.slane %v161, 1
      %v953 = vrot.slane %v162, 1
      %v954 = vsel %vm885, %v952, %v953
      %v955 = vrot.slane %v163, 1
      %v956 = vrot.slane %v164, 1
      %v957 = vsel %vm885, %v955, %v956
      %v958 = vrot.slane %v165, 1
      %v959 = vrot.slane %v166, 1
      %v960 = vsel %vm885, %v958, %v959
      %v961 = vrot.slane %v167, 1
      %v962 = vrot.slane %v168, 1
      %v963 = vsel %vm885, %v961, %v962
      %v964 = vrot.slane %v169, 1
      %v965 = vrot.slane %v170, 1
      %v966 = vsel %vm885, %v964, %v965
      %v967 = vrot.slane %v171, 1
      %v968 = vrot.slane %v172, 1
      %v969 = vsel %vm885, %v967, %v968
      %v970 = vrot.slane %v173, 1
      %v971 = vrot.slane %v174, 1
      %v972 = vsel %vm885, %v970, %v971
      %v973 = vrot.slane %v175, 1
      %v974 = vrot.slane %v176, 1
      %v975 = vsel %vm885, %v973, %v974
      %v976 = vrot.slane %v177, 1
      %v977 = vrot.slane %v178, 1
      %v978 = vsel %vm885, %v976, %v977
      %v979 = vrot.slane %v179, 1
      %v980 = vrot.slane %v180, 1
      %v981 = vsel %vm885, %v979, %v980
      %v982 = vrot.slane %v181, 1
      %v983 = vrot.slane %v182, 1
      %v984 = vsel %vm885, %v982, %v983
      %v985 = vrot.slane %v183, 1
      %v986 = vrot.slane %v184, 1
      %v987 = vsel %vm885, %v985, %v986
      %v988 = vrot.slane %v185, 1
      %v989 = vrot.slane %v186, 1
      %v990 = vsel %vm885, %v988, %v989
      %v991 = vrot.slane %v187, 1
      %v992 = vrot.slane %v188, 1
      %v993 = vsel %vm885, %v991, %v992
      %v994 = vrot.slane %v189, 1
      %v995 = vrot.slane %v190, 1
      %v996 = vsel %vm885, %v994, %v995
      %v997 = vrot.slane %v191, 1
      %v998 = vrot.slane %v192, 1
      %v999 = vsel %vm885, %v997, %v998
      %v1000 = vrot.slane %v193, 1
      %v1001 = vrot.slane %v194, 1
      %v1002 = vsel %vm885, %v1000, %v1001
      %v1003 = vrot.slane %v195, 1
      %v1004 = vrot.slane %v196, 1
      %v1005 = vsel %vm885, %v1003, %v1004
      %v1006 = vrot.slane %v197, 1
      %v1007 = vrot.slane %v198, 1
      %v1008 = vsel %vm885, %v1006, %v1007
      %v1009 = vrot.slane %v199, 1
      %v1010 = vrot.slane %v200, 1
      %v1011 = vsel %vm885, %v1009, %v1010
      %v1012 = vrot.slane %v201, 1
      %v1013 = vrot.slane %v202, 1
      %v1014 = vsel %vm885, %v1012, %v1013
      %v1015 = vrot.slane %v203, 1
      %v1016 = vrot.slane %v204, 1
      %v1017 = vsel %vm885, %v1015, %v1016
      %v1018 = vrot.slane %v205, 1
      %v1019 = vrot.slane %v206, 1
      %v1020 = vsel %vm885, %v1018, %v1019
      %v1021 = vrot.slane %v207, 1
      %v1022 = vrot.slane %v208, 1
      %v1023 = vsel %vm885, %v1021, %v1022
      %v1024 = vrot.slane %v209, 1
      %v1025 = vrot.slane %v210, 1
      %v1026 = vsel %vm885, %v1024, %v1025
      %v1027 = vrot.slane %v211, 1
      %v1028 = vrot.slane %v212, 1
      %v1029 = vsel %vm885, %v1027, %v1028
      %v1030 = vrot.slane %v213, 1
      %v1031 = vrot.slane %v214, 1
      %v1032 = vsel %vm885, %v1030, %v1031
      %v1033 = vrot.slane %v215, 1
      %v1034 = vrot.slane %v216, 1
      %v1035 = vsel %vm885, %v1033, %v1034
      %v1036 = vrot.slane %v217, 1
      %v1037 = vrot.slane %v218, 1
      %v1038 = vsel %vm885, %v1036, %v1037
      %v1039 = vrot.slane %v219, 1
      %v1040 = vrot.slane %v220, 1
      %v1041 = vsel %vm885, %v1039, %v1040
      %v1042 = vrot.slane %v221, 1
      %v1043 = vrot.slane %v222, 1
      %v1044 = vsel %vm885, %v1042, %v1043
      %v1045 = vrot.slane %v223, 1
      %v1046 = vrot.slane %v224, 1
      %v1047 = vsel %vm885, %v1045, %v1046
      %v1048 = vrot.slane %v225, 1
      %v1049 = vrot.slane %v226, 1
      %v1050 = vsel %vm885, %v1048, %v1049
      %v1051 = vrot.slane %v227, 1
      %v1052 = vrot.slane %v228, 1
      %v1053 = vsel %vm885, %v1051, %v1052
      %v1054 = vrot.slane %v229, 1
      %v1055 = vrot.slane %v230, 1
      %v1056 = vsel %vm885, %v1054, %v1055
      %v1057 = vrot.slane %v231, 1
      %v1058 = vrot.slane %v232, 1
      %v1059 = vsel %vm885, %v1057, %v1058
      %v1060 = vrot.slane %v233, 1
      %v1061 = vrot.slane %v234, 1
      %v1062 = vsel %vm885, %v1060, %v1061
      %v1063 = vrot.slane %v235, 1
      %v1064 = vrot.slane %v236, 1
      %v1065 = vsel %vm885, %v1063, %v1064
      %v1066 = vrot.slane %v237, 1
      %v1067 = vrot.slane %v238, 1
      %v1068 = vsel %vm885, %v1066, %v1067
      %v1069 = vrot.slane %v239, 1
      %v1070 = vrot.slane %v240, 1
      %v1071 = vsel %vm885, %v1069, %v1070
      %v1072 = vrot.slane %v241, 1
      %v1073 = vrot.slane %v242, 1
      %v1074 = vsel %vm885, %v1072, %v1073
      %v1075 = vrot.slane %v243, 1
      %v1076 = vrot.slane %v244, 1
      %v1077 = vsel %vm885, %v1075, %v1076
      %v1142 = vmax.f32 %v757, %v888
      %v1143 = vmax.f32 %v758, %v891
      %v1144 = vmax.f32 %v759, %v894
      %v1145 = vmax.f32 %v760, %v897
      %v1146 = vmax.f32 %v761, %v900
      %v1147 = vmax.f32 %v762, %v903
      %v1148 = vmax.f32 %v763, %v906
      %v1149 = vmax.f32 %v764, %v909
      %v1150 = vmax.f32 %v765, %v912
      %v1151 = vmax.f32 %v766, %v915
      %v1152 = vmax.f32 %v767, %v918
      %v1153 = vmax.f32 %v768, %v921
      %v1154 = vmax.f32 %v769, %v924
      %v1155 = vmax.f32 %v770, %v927
      %v1156 = vmax.f32 %v771, %v930
      %v1157 = vmax.f32 %v772, %v933
      %v1158 = vmax.f32 %v773, %v936
      %v1159 = vmax.f32 %v774, %v939
      %v1160 = vmax.f32 %v775, %v942
      %v1161 = vmax.f32 %v776, %v945
      %v1162 = vmax.f32 %v777, %v948
      %v1163 = vmax.f32 %v778, %v951
      %v1164 = vmax.f32 %v779, %v954
      %v1165 = vmax.f32 %v780, %v957
      %v1166 = vmax.f32 %v781, %v960
      %v1167 = vmax.f32 %v782, %v963
      %v1168 = vmax.f32 %v783, %v966
      %v1169 = vmax.f32 %v784, %v969
      %v1170 = vmax.f32 %v785, %v972
      %v1171 = vmax.f32 %v786, %v975
      %v1172 = vmax.f32 %v787, %v978
      %v1173 = vmax.f32 %v788, %v981
      %v1174 = vmax.f32 %v789, %v984
      %v1175 = vmax.f32 %v790, %v987
      %v1176 = vmax.f32 %v791, %v990
      %v1177 = vmax.f32 %v792, %v993
      %v1178 = vmax.f32 %v793, %v996
      %v1179 = vmax.f32 %v794, %v999
      %v1180 = vmax.f32 %v795, %v1002
      %v1181 = vmax.f32 %v796, %v1005
      %v1182 = vmax.f32 %v797, %v1008
      %v1183 = vmax.f32 %v798, %v1011
      %v1184 = vmax.f32 %v799, %v1014
      %v1185 = vmax.f32 %v800, %v1017
      %v1186 = vmax.f32 %v801, %v1020
      %v1187 = vmax.f32 %v802, %v1023
      %v1188 = vmax.f32 %v803, %v1026
      %v1189 = vmax.f32 %v804, %v1029
      %v1190 = vmax.f32 %v805, %v1032
      %v1191 = vmax.f32 %v806, %v1035
      %v1192 = vmax.f32 %v807, %v1038
      %v1193 = vmax.f32 %v808, %v1041
      %v1194 = vmax.f32 %v809, %v1044
      %v1195 = vmax.f32 %v810, %v1047
      %v1196 = vmax.f32 %v811, %v1050
      %v1197 = vmax.f32 %v812, %v1053
      %v1198 = vmax.f32 %v813, %v1056
      %v1199 = vmax.f32 %v814, %v1059
      %v1200 = vmax.f32 %v815, %v1062
      %v1201 = vmax.f32 %v816, %v1065
      %v1202 = vmax.f32 %v817, %v1068
      %v1203 = vmax.f32 %v818, %v1071
      %v1204 = vmax.f32 %v819, %v1074
      %v1205 = vmax.f32 %v820, %v1077
      %1206 = vrot.lane.b32.xlu0 %v888, 127
      %v1207 = vpop.permute.xlu0 %1206
      %1208 = vrot.lane.b32.xlu0 %v891, 127
      %v1209 = vpop.permute.xlu0 %1208
      %1210 = vrot.lane.b32.xlu0 %v894, 127
      %v1211 = vpop.permute.xlu0 %1210
      %1212 = vrot.lane.b32.xlu0 %v897, 127
      %v1213 = vpop.permute.xlu0 %1212
      %1214 = vrot.lane.b32.xlu0 %v900, 127
      %v1215 = vpop.permute.xlu0 %1214
      %1216 = vrot.lane.b32.xlu0 %v903, 127
      %v1217 = vpop.permute.xlu0 %1216
      %1218 = vrot.lane.b32.xlu0 %v906, 127
      %v1219 = vpop.permute.xlu0 %1218
      %1220 = vrot.lane.b32.xlu0 %v909, 127
      %v1221 = vpop.permute.xlu0 %1220
      %1222 = vrot.lane.b32.xlu0 %v912, 127
      %v1223 = vpop.permute.xlu0 %1222
      %1224 = vrot.lane.b32.xlu0 %v915, 127
      %v1225 = vpop.permute.xlu0 %1224
      %1226 = vrot.lane.b32.xlu0 %v918, 127
      %v1227 = vpop.permute.xlu0 %1226
      %1228 = vrot.lane.b32.xlu0 %v921, 127
      %v1229 = vpop.permute.xlu0 %1228
      %1230 = vrot.lane.b32.xlu0 %v924, 127
      %v1231 = vpop.permute.xlu0 %1230
      %1232 = vrot.lane.b32.xlu0 %v927, 127
      %v1233 = vpop.permute.xlu0 %1232
      %1234 = vrot.lane.b32.xlu0 %v930, 127
      %v1235 = vpop.permute.xlu0 %1234
      %1236 = vrot.lane.b32.xlu0 %v933, 127
      %v1237 = vpop.permute.xlu0 %1236
      %1238 = vrot.lane.b32.xlu0 %v936, 127
      %v1239 = vpop.permute.xlu0 %1238
      %1240 = vrot.lane.b32.xlu0 %v939, 127
      %v1241 = vpop.permute.xlu0 %1240
      %1242 = vrot.lane.b32.xlu0 %v942, 127
      %v1243 = vpop.permute.xlu0 %1242
      %1244 = vrot.lane.b32.xlu0 %v945, 127
      %v1245 = vpop.permute.xlu0 %1244
      %1246 = vrot.lane.b32.xlu0 %v948, 127
      %v1247 = vpop.permute.xlu0 %1246
      %1248 = vrot.lane.b32.xlu0 %v951, 127
      %v1249 = vpop.permute.xlu0 %1248
      %1250 = vrot.lane.b32.xlu0 %v954, 127
      %v1251 = vpop.permute.xlu0 %1250
      %1252 = vrot.lane.b32.xlu0 %v957, 127
      %v1253 = vpop.permute.xlu0 %1252
      %1254 = vrot.lane.b32.xlu0 %v960, 127
      %v1255 = vpop.permute.xlu0 %1254
      %1256 = vrot.lane.b32.xlu0 %v963, 127
      %v1257 = vpop.permute.xlu0 %1256
      %1258 = vrot.lane.b32.xlu0 %v966, 127
      %v1259 = vpop.permute.xlu0 %1258
      %1260 = vrot.lane.b32.xlu0 %v969, 127
      %v1261 = vpop.permute.xlu0 %1260
      %1262 = vrot.lane.b32.xlu0 %v972, 127
      %v1263 = vpop.permute.xlu0 %1262
      %1264 = vrot.lane.b32.xlu0 %v975, 127
      %v1265 = vpop.permute.xlu0 %1264
      %1266 = vrot.lane.b32.xlu0 %v978, 127
      %v1267 = vpop.permute.xlu0 %1266
      %1268 = vrot.lane.b32.xlu0 %v981, 127
      %v1269 = vpop.permute.xlu0 %1268
      %1270 = vrot.lane.b32.xlu0 %v984, 127
      %v1271 = vpop.permute.xlu0 %1270
      %1272 = vrot.lane.b32.xlu0 %v987, 127
      %v1273 = vpop.permute.xlu0 %1272
      %1274 = vrot.lane.b32.xlu0 %v990, 127
      %v1275 = vpop.permute.xlu0 %1274
      %1276 = vrot.lane.b32.xlu0 %v993, 127
      %v1277 = vpop.permute.xlu0 %1276
      %1278 = vrot.lane.b32.xlu0 %v996, 127
      %v1279 = vpop.permute.xlu0 %1278
      %1280 = vrot.lane.b32.xlu0 %v999, 127
      %v1281 = vpop.permute.xlu0 %1280
      %1282 = vrot.lane.b32.xlu0 %v1002, 127
      %v1283 = vpop.permute.xlu0 %1282
      %1284 = vrot.lane.b32.xlu0 %v1005, 127
      %v1285 = vpop.permute.xlu0 %1284
      %1286 = vrot.lane.b32.xlu0 %v1008, 127
      %v1287 = vpop.permute.xlu0 %1286
      %1288 = vrot.lane.b32.xlu0 %v1011, 127
      %v1289 = vpop.permute.xlu0 %1288
      %1290 = vrot.lane.b32.xlu0 %v1014, 127
      %v1291 = vpop.permute.xlu0 %1290
      %1292 = vrot.lane.b32.xlu0 %v1017, 127
      %v1293 = vpop.permute.xlu0 %1292
      %1294 = vrot.lane.b32.xlu0 %v1020, 127
      %v1295 = vpop.permute.xlu0 %1294
      %1296 = vrot.lane.b32.xlu0 %v1023, 127
      %v1297 = vpop.permute.xlu0 %1296
      %1298 = vrot.lane.b32.xlu0 %v1026, 127
      %v1299 = vpop.permute.xlu0 %1298
      %1300 = vrot.lane.b32.xlu0 %v1029, 127
      %v1301 = vpop.permute.xlu0 %1300
      %1302 = vrot.lane.b32.xlu0 %v1032, 127
      %v1303 = vpop.permute.xlu0 %1302
      %1304 = vrot.lane.b32.xlu0 %v1035, 127
      %v1305 = vpop.permute.xlu0 %1304
      %1306 = vrot.lane.b32.xlu0 %v1038, 127
      %v1307 = vpop.permute.xlu0 %1306
      %1308 = vrot.lane.b32.xlu0 %v1041, 127
      %v1309 = vpop.permute.xlu0 %1308
      %1310 = vrot.lane.b32.xlu0 %v1044, 127
      %v1311 = vpop.permute.xlu0 %1310
      %1312 = vrot.lane.b32.xlu0 %v1047, 127
      %v1313 = vpop.permute.xlu0 %1312
      %1314 = vrot.lane.b32.xlu0 %v1050, 127
      %v1315 = vpop.permute.xlu0 %1314
      %1316 = vrot.lane.b32.xlu0 %v1053, 127
      %v1317 = vpop.permute.xlu0 %1316
      %1318 = vrot.lane.b32.xlu0 %v1056, 127
      %v1319 = vpop.permute.xlu0 %1318
      %1320 = vrot.lane.b32.xlu0 %v1059, 127
      %v1321 = vpop.permute.xlu0 %1320
      %1322 = vrot.lane.b32.xlu0 %v1062, 127
      %v1323 = vpop.permute.xlu0 %1322
      %1324 = vrot.lane.b32.xlu0 %v1065, 127
      %v1325 = vpop.permute.xlu0 %1324
      %1326 = vrot.lane.b32.xlu0 %v1068, 127
      %v1327 = vpop.permute.xlu0 %1326
      %1328 = vrot.lane.b32.xlu0 %v1071, 127
      %v1329 = vpop.permute.xlu0 %1328
      %1330 = vrot.lane.b32.xlu0 %v1074, 127
      %v1331 = vpop.permute.xlu0 %1330
      %1332 = vrot.lane.b32.xlu0 %v1077, 127
      %v1333 = vpop.permute.xlu0 %1332
      %v1398 = vmax.f32 %v1142, %v1207
      %v1399 = vmax.f32 %v1143, %v1209
      %v1400 = vmax.f32 %v1144, %v1211
      %v1401 = vmax.f32 %v1145, %v1213
      %v1402 = vmax.f32 %v1146, %v1215
      %v1403 = vmax.f32 %v1147, %v1217
      %v1404 = vmax.f32 %v1148, %v1219
      %v1405 = vmax.f32 %v1149, %v1221
      %v1406 = vmax.f32 %v1150, %v1223
      %v1407 = vmax.f32 %v1151, %v1225
      %v1408 = vmax.f32 %v1152, %v1227
      %v1409 = vmax.f32 %v1153, %v1229
      %v1410 = vmax.f32 %v1154, %v1231
      %v1411 = vmax.f32 %v1155, %v1233
      %v1412 = vmax.f32 %v1156, %v1235
      %v1413 = vmax.f32 %v1157, %v1237
      %v1414 = vmax.f32 %v1158, %v1239
      %v1415 = vmax.f32 %v1159, %v1241
      %v1416 = vmax.f32 %v1160, %v1243
      %v1417 = vmax.f32 %v1161, %v1245
      %v1418 = vmax.f32 %v1162, %v1247
      %v1419 = vmax.f32 %v1163, %v1249
      %v1420 = vmax.f32 %v1164, %v1251
      %v1421 = vmax.f32 %v1165, %v1253
      %v1422 = vmax.f32 %v1166, %v1255
      %v1423 = vmax.f32 %v1167, %v1257
      %v1424 = vmax.f32 %v1168, %v1259
      %v1425 = vmax.f32 %v1169, %v1261
      %v1426 = vmax.f32 %v1170, %v1263
      %v1427 = vmax.f32 %v1171, %v1265
      %v1428 = vmax.f32 %v1172, %v1267
      %v1429 = vmax.f32 %v1173, %v1269
      %v1430 = vmax.f32 %v1174, %v1271
      %v1431 = vmax.f32 %v1175, %v1273
      %v1432 = vmax.f32 %v1176, %v1275
      %v1433 = vmax.f32 %v1177, %v1277
      %v1434 = vmax.f32 %v1178, %v1279
      %v1435 = vmax.f32 %v1179, %v1281
      %v1436 = vmax.f32 %v1180, %v1283
      %v1437 = vmax.f32 %v1181, %v1285
      %v1438 = vmax.f32 %v1182, %v1287
      %v1439 = vmax.f32 %v1183, %v1289
      %v1440 = vmax.f32 %v1184, %v1291
      %v1441 = vmax.f32 %v1185, %v1293
      %v1442 = vmax.f32 %v1186, %v1295
      %v1443 = vmax.f32 %v1187, %v1297
      %v1444 = vmax.f32 %v1188, %v1299
      %v1445 = vmax.f32 %v1189, %v1301
      %v1446 = vmax.f32 %v1190, %v1303
      %v1447 = vmax.f32 %v1191, %v1305
      %v1448 = vmax.f32 %v1192, %v1307
      %v1449 = vmax.f32 %v1193, %v1309
      %v1450 = vmax.f32 %v1194, %v1311
      %v1451 = vmax.f32 %v1195, %v1313
      %v1452 = vmax.f32 %v1196, %v1315
      %v1453 = vmax.f32 %v1197, %v1317
      %v1454 = vmax.f32 %v1198, %v1319
      %v1455 = vmax.f32 %v1199, %v1321
      %v1456 = vmax.f32 %v1200, %v1323
      %v1457 = vmax.f32 %v1201, %v1325
      %v1458 = vmax.f32 %v1202, %v1327
      %v1459 = vmax.f32 %v1203, %v1329
      %v1460 = vmax.f32 %v1204, %v1331
      %v1461 = vmax.f32 %v1205, %v1333
      %1462 = vrot.lane.b32.xlu0 %v888, 126
      %v1463 = vpop.permute.xlu0 %1462
      %1464 = vrot.lane.b32.xlu0 %v891, 126
      %v1465 = vpop.permute.xlu0 %1464
      %1466 = vrot.lane.b32.xlu0 %v894, 126
      %v1467 = vpop.permute.xlu0 %1466
      %1468 = vrot.lane.b32.xlu0 %v897, 126
      %v1469 = vpop.permute.xlu0 %1468
      %1470 = vrot.lane.b32.xlu0 %v900, 126
      %v1471 = vpop.permute.xlu0 %1470
      %1472 = vrot.lane.b32.xlu0 %v903, 126
      %v1473 = vpop.permute.xlu0 %1472
      %1474 = vrot.lane.b32.xlu0 %v906, 126
      %v1475 = vpop.permute.xlu0 %1474
      %1476 = vrot.lane.b32.xlu0 %v909, 126
      %v1477 = vpop.permute.xlu0 %1476
      %1478 = vrot.lane.b32.xlu0 %v912, 126
      %v1479 = vpop.permute.xlu0 %1478
      %1480 = vrot.lane.b32.xlu0 %v915, 126
      %v1481 = vpop.permute.xlu0 %1480
      %1482 = vrot.lane.b32.xlu0 %v918, 126
      %v1483 = vpop.permute.xlu0 %1482
      %1484 = vrot.lane.b32.xlu0 %v921, 126
      %v1485 = vpop.permute.xlu0 %1484
      %1486 = vrot.lane.b32.xlu0 %v924, 126
      %v1487 = vpop.permute.xlu0 %1486
      %1488 = vrot.lane.b32.xlu0 %v927, 126
      %v1489 = vpop.permute.xlu0 %1488
      %1490 = vrot.lane.b32.xlu0 %v930, 126
      %v1491 = vpop.permute.xlu0 %1490
      %1492 = vrot.lane.b32.xlu0 %v933, 126
      %v1493 = vpop.permute.xlu0 %1492
      %1494 = vrot.lane.b32.xlu0 %v936, 126
      %v1495 = vpop.permute.xlu0 %1494
      %1496 = vrot.lane.b32.xlu0 %v939, 126
      %v1497 = vpop.permute.xlu0 %1496
      %1498 = vrot.lane.b32.xlu0 %v942, 126
      %v1499 = vpop.permute.xlu0 %1498
      %1500 = vrot.lane.b32.xlu0 %v945, 126
      %v1501 = vpop.permute.xlu0 %1500
      %1502 = vrot.lane.b32.xlu0 %v948, 126
      %v1503 = vpop.permute.xlu0 %1502
      %1504 = vrot.lane.b32.xlu0 %v951, 126
      %v1505 = vpop.permute.xlu0 %1504
      %1506 = vrot.lane.b32.xlu0 %v954, 126
      %v1507 = vpop.permute.xlu0 %1506
      %1508 = vrot.lane.b32.xlu0 %v957, 126
      %v1509 = vpop.permute.xlu0 %1508
      %1510 = vrot.lane.b32.xlu0 %v960, 126
      %v1511 = vpop.permute.xlu0 %1510
      %1512 = vrot.lane.b32.xlu0 %v963, 126
      %v1513 = vpop.permute.xlu0 %1512
      %1514 = vrot.lane.b32.xlu0 %v966, 126
      %v1515 = vpop.permute.xlu0 %1514
      %1516 = vrot.lane.b32.xlu0 %v969, 126
      %v1517 = vpop.permute.xlu0 %1516
      %1518 = vrot.lane.b32.xlu0 %v972, 126
      %v1519 = vpop.permute.xlu0 %1518
      %1520 = vrot.lane.b32.xlu0 %v975, 126
      %v1521 = vpop.permute.xlu0 %1520
      %1522 = vrot.lane.b32.xlu0 %v978, 126
      %v1523 = vpop.permute.xlu0 %1522
      %1524 = vrot.lane.b32.xlu0 %v981, 126
      %v1525 = vpop.permute.xlu0 %1524
      %1526 = vrot.lane.b32.xlu0 %v984, 126
      %v1527 = vpop.permute.xlu0 %1526
      %1528 = vrot.lane.b32.xlu0 %v987, 126
      %v1529 = vpop.permute.xlu0 %1528
      %1530 = vrot.lane.b32.xlu0 %v990, 126
      %v1531 = vpop.permute.xlu0 %1530
      %1532 = vrot.lane.b32.xlu0 %v993, 126
      %v1533 = vpop.permute.xlu0 %1532
      %1534 = vrot.lane.b32.xlu0 %v996, 126
      %v1535 = vpop.permute.xlu0 %1534
      %1536 = vrot.lane.b32.xlu0 %v999, 126
      %v1537 = vpop.permute.xlu0 %1536
      %1538 = vrot.lane.b32.xlu0 %v1002, 126
      %v1539 = vpop.permute.xlu0 %1538
      %1540 = vrot.lane.b32.xlu0 %v1005, 126
      %v1541 = vpop.permute.xlu0 %1540
      %1542 = vrot.lane.b32.xlu0 %v1008, 126
      %v1543 = vpop.permute.xlu0 %1542
      %1544 = vrot.lane.b32.xlu0 %v1011, 126
      %v1545 = vpop.permute.xlu0 %1544
      %1546 = vrot.lane.b32.xlu0 %v1014, 126
      %v1547 = vpop.permute.xlu0 %1546
      %1548 = vrot.lane.b32.xlu0 %v1017, 126
      %v1549 = vpop.permute.xlu0 %1548
      %1550 = vrot.lane.b32.xlu0 %v1020, 126
      %v1551 = vpop.permute.xlu0 %1550
      %1552 = vrot.lane.b32.xlu0 %v1023, 126
      %v1553 = vpop.permute.xlu0 %1552
      %1554 = vrot.lane.b32.xlu0 %v1026, 126
      %v1555 = vpop.permute.xlu0 %1554
      %1556 = vrot.lane.b32.xlu0 %v1029, 126
      %v1557 = vpop.permute.xlu0 %1556
      %1558 = vrot.lane.b32.xlu0 %v1032, 126
      %v1559 = vpop.permute.xlu0 %1558
      %1560 = vrot.lane.b32.xlu0 %v1035, 126
      %v1561 = vpop.permute.xlu0 %1560
      %1562 = vrot.lane.b32.xlu0 %v1038, 126
      %v1563 = vpop.permute.xlu0 %1562
      %1564 = vrot.lane.b32.xlu0 %v1041, 126
      %v1565 = vpop.permute.xlu0 %1564
      %1566 = vrot.lane.b32.xlu0 %v1044, 126
      %v1567 = vpop.permute.xlu0 %1566
      %1568 = vrot.lane.b32.xlu0 %v1047, 126
      %v1569 = vpop.permute.xlu0 %1568
      %1570 = vrot.lane.b32.xlu0 %v1050, 126
      %v1571 = vpop.permute.xlu0 %1570
      %1572 = vrot.lane.b32.xlu0 %v1053, 126
      %v1573 = vpop.permute.xlu0 %1572
      %1574 = vrot.lane.b32.xlu0 %v1056, 126
      %v1575 = vpop.permute.xlu0 %1574
      %1576 = vrot.lane.b32.xlu0 %v1059, 126
      %v1577 = vpop.permute.xlu0 %1576
      %1578 = vrot.lane.b32.xlu0 %v1062, 126
      %v1579 = vpop.permute.xlu0 %1578
      %1580 = vrot.lane.b32.xlu0 %v1065, 126
      %v1581 = vpop.permute.xlu0 %1580
      %1582 = vrot.lane.b32.xlu0 %v1068, 126
      %v1583 = vpop.permute.xlu0 %1582
      %1584 = vrot.lane.b32.xlu0 %v1071, 126
      %v1585 = vpop.permute.xlu0 %1584
      %1586 = vrot.lane.b32.xlu0 %v1074, 126
      %v1587 = vpop.permute.xlu0 %1586
      %1588 = vrot.lane.b32.xlu0 %v1077, 126
      %v1589 = vpop.permute.xlu0 %1588
      %v1654 = vmax.f32 %v1398, %v1463
      %v1655 = vmax.f32 %v1399, %v1465
      %v1656 = vmax.f32 %v1400, %v1467
      %v1657 = vmax.f32 %v1401, %v1469
      %v1658 = vmax.f32 %v1402, %v1471
      %v1659 = vmax.f32 %v1403, %v1473
      %v1660 = vmax.f32 %v1404, %v1475
      %v1661 = vmax.f32 %v1405, %v1477
      %v1662 = vmax.f32 %v1406, %v1479
      %v1663 = vmax.f32 %v1407, %v1481
      %v1664 = vmax.f32 %v1408, %v1483
      %v1665 = vmax.f32 %v1409, %v1485
      %v1666 = vmax.f32 %v1410, %v1487
      %v1667 = vmax.f32 %v1411, %v1489
      %v1668 = vmax.f32 %v1412, %v1491
      %v1669 = vmax.f32 %v1413, %v1493
      %v1670 = vmax.f32 %v1414, %v1495
      %v1671 = vmax.f32 %v1415, %v1497
      %v1672 = vmax.f32 %v1416, %v1499
      %v1673 = vmax.f32 %v1417, %v1501
      %v1674 = vmax.f32 %v1418, %v1503
      %v1675 = vmax.f32 %v1419, %v1505
      %v1676 = vmax.f32 %v1420, %v1507
      %v1677 = vmax.f32 %v1421, %v1509
      %v1678 = vmax.f32 %v1422, %v1511
      %v1679 = vmax.f32 %v1423, %v1513
      %v1680 = vmax.f32 %v1424, %v1515
      %v1681 = vmax.f32 %v1425, %v1517
      %v1682 = vmax.f32 %v1426, %v1519
      %v1683 = vmax.f32 %v1427, %v1521
      %v1684 = vmax.f32 %v1428, %v1523
      %v1685 = vmax.f32 %v1429, %v1525
      %v1686 = vmax.f32 %v1430, %v1527
      %v1687 = vmax.f32 %v1431, %v1529
      %v1688 = vmax.f32 %v1432, %v1531
      %v1689 = vmax.f32 %v1433, %v1533
      %v1690 = vmax.f32 %v1434, %v1535
      %v1691 = vmax.f32 %v1435, %v1537
      %v1692 = vmax.f32 %v1436, %v1539
      %v1693 = vmax.f32 %v1437, %v1541
      %v1694 = vmax.f32 %v1438, %v1543
      %v1695 = vmax.f32 %v1439, %v1545
      %v1696 = vmax.f32 %v1440, %v1547
      %v1697 = vmax.f32 %v1441, %v1549
      %v1698 = vmax.f32 %v1442, %v1551
      %v1699 = vmax.f32 %v1443, %v1553
      %v1700 = vmax.f32 %v1444, %v1555
      %v1701 = vmax.f32 %v1445, %v1557
      %v1702 = vmax.f32 %v1446, %v1559
      %v1703 = vmax.f32 %v1447, %v1561
      %v1704 = vmax.f32 %v1448, %v1563
      %v1705 = vmax.f32 %v1449, %v1565
      %v1706 = vmax.f32 %v1450, %v1567
      %v1707 = vmax.f32 %v1451, %v1569
      %v1708 = vmax.f32 %v1452, %v1571
      %v1709 = vmax.f32 %v1453, %v1573
      %v1710 = vmax.f32 %v1454, %v1575
      %v1711 = vmax.f32 %v1455, %v1577
      %v1712 = vmax.f32 %v1456, %v1579
      %v1713 = vmax.f32 %v1457, %v1581
      %v1714 = vmax.f32 %v1458, %v1583
      %v1715 = vmax.f32 %v1459, %v1585
      %v1716 = vmax.f32 %v1460, %v1587
      %v1717 = vmax.f32 %v1461, %v1589
      %vm1718 = vcmask 1045504
      %v1719 = vrot.slane %v117, 2
      %v1720 = vrot.slane %v118, 2
      %v1721 = vsel %vm1718, %v1719, %v1720
      %v1722 = vrot.slane %v119, 2
      %v1723 = vrot.slane %v120, 2
      %v1724 = vsel %vm1718, %v1722, %v1723
      %v1725 = vrot.slane %v121, 2
      %v1726 = vrot.slane %v122, 2
      %v1727 = vsel %vm1718, %v1725, %v1726
      %v1728 = vrot.slane %v123, 2
      %v1729 = vrot.slane %v124, 2
      %v1730 = vsel %vm1718, %v1728, %v1729
      %v1731 = vrot.slane %v125, 2
      %v1732 = vrot.slane %v126, 2
      %v1733 = vsel %vm1718, %v1731, %v1732
      %v1734 = vrot.slane %v127, 2
      %v1735 = vrot.slane %v128, 2
      %v1736 = vsel %vm1718, %v1734, %v1735
      %v1737 = vrot.slane %v129, 2
      %v1738 = vrot.slane %v130, 2
      %v1739 = vsel %vm1718, %v1737, %v1738
      %v1740 = vrot.slane %v131, 2
      %v1741 = vrot.slane %v132, 2
      %v1742 = vsel %vm1718, %v1740, %v1741
      %v1743 = vrot.slane %v133, 2
      %v1744 = vrot.slane %v134, 2
      %v1745 = vsel %vm1718, %v1743, %v1744
      %v1746 = vrot.slane %v135, 2
      %v1747 = vrot.slane %v136, 2
      %v1748 = vsel %vm1718, %v1746, %v1747
      %v1749 = vrot.slane %v137, 2
      %v1750 = vrot.slane %v138, 2
      %v1751 = vsel %vm1718, %v1749, %v1750
      %v1752 = vrot.slane %v139, 2
      %v1753 = vrot.slane %v140, 2
      %v1754 = vsel %vm1718, %v1752, %v1753
      %v1755 = vrot.slane %v141, 2
      %v1756 = vrot.slane %v142, 2
      %v1757 = vsel %vm1718, %v1755, %v1756
      %v1758 = vrot.slane %v143, 2
      %v1759 = vrot.slane %v144, 2
      %v1760 = vsel %vm1718, %v1758, %v1759
      %v1761 = vrot.slane %v145, 2
      %v1762 = vrot.slane %v146, 2
      %v1763 = vsel %vm1718, %v1761, %v1762
      %v1764 = vrot.slane %v147, 2
      %v1765 = vrot.slane %v148, 2
      %v1766 = vsel %vm1718, %v1764, %v1765
      %v1767 = vrot.slane %v149, 2
      %v1768 = vrot.slane %v150, 2
      %v1769 = vsel %vm1718, %v1767, %v1768
      %v1770 = vrot.slane %v151, 2
      %v1771 = vrot.slane %v152, 2
      %v1772 = vsel %vm1718, %v1770, %v1771
      %v1773 = vrot.slane %v153, 2
      %v1774 = vrot.slane %v154, 2
      %v1775 = vsel %vm1718, %v1773, %v1774
      %v1776 = vrot.slane %v155, 2
      %v1777 = vrot.slane %v156, 2
      %v1778 = vsel %vm1718, %v1776, %v1777
      %v1779 = vrot.slane %v157, 2
      %v1780 = vrot.slane %v158, 2
      %v1781 = vsel %vm1718, %v1779, %v1780
      %v1782 = vrot.slane %v159, 2
      %v1783 = vrot.slane %v160, 2
      %v1784 = vsel %vm1718, %v1782, %v1783
      %v1785 = vrot.slane %v161, 2
      %v1786 = vrot.slane %v162, 2
      %v1787 = vsel %vm1718, %v1785, %v1786
      %v1788 = vrot.slane %v163, 2
      %v1789 = vrot.slane %v164, 2
      %v1790 = vsel %vm1718, %v1788, %v1789
      %v1791 = vrot.slane %v165, 2
      %v1792 = vrot.slane %v166, 2
      %v1793 = vsel %vm1718, %v1791, %v1792
      %v1794 = vrot.slane %v167, 2
      %v1795 = vrot.slane %v168, 2
      %v1796 = vsel %vm1718, %v1794, %v1795
      %v1797 = vrot.slane %v169, 2
      %v1798 = vrot.slane %v170, 2
      %v1799 = vsel %vm1718, %v1797, %v1798
      %v1800 = vrot.slane %v171, 2
      %v1801 = vrot.slane %v172, 2
      %v1802 = vsel %vm1718, %v1800, %v1801
      %v1803 = vrot.slane %v173, 2
      %v1804 = vrot.slane %v174, 2
      %v1805 = vsel %vm1718, %v1803, %v1804
      %v1806 = vrot.slane %v175, 2
      %v1807 = vrot.slane %v176, 2
      %v1808 = vsel %vm1718, %v1806, %v1807
      %v1809 = vrot.slane %v177, 2
      %v1810 = vrot.slane %v178, 2
      %v1811 = vsel %vm1718, %v1809, %v1810
      %v1812 = vrot.slane %v179, 2
      %v1813 = vrot.slane %v180, 2
      %v1814 = vsel %vm1718, %v1812, %v1813
      %v1815 = vrot.slane %v181, 2
      %v1816 = vrot.slane %v182, 2
      %v1817 = vsel %vm1718, %v1815, %v1816
      %v1818 = vrot.slane %v183, 2
      %v1819 = vrot.slane %v184, 2
      %v1820 = vsel %vm1718, %v1818, %v1819
      %v1821 = vrot.slane %v185, 2
      %v1822 = vrot.slane %v186, 2
      %v1823 = vsel %vm1718, %v1821, %v1822
      %v1824 = vrot.slane %v187, 2
      %v1825 = vrot.slane %v188, 2
      %v1826 = vsel %vm1718, %v1824, %v1825
      %v1827 = vrot.slane %v189, 2
      %v1828 = vrot.slane %v190, 2
      %v1829 = vsel %vm1718, %v1827, %v1828
      %v1830 = vrot.slane %v191, 2
      %v1831 = vrot.slane %v192, 2
      %v1832 = vsel %vm1718, %v1830, %v1831
      %v1833 = vrot.slane %v193, 2
      %v1834 = vrot.slane %v194, 2
      %v1835 = vsel %vm1718, %v1833, %v1834
      %v1836 = vrot.slane %v195, 2
      %v1837 = vrot.slane %v196, 2
      %v1838 = vsel %vm1718, %v1836, %v1837
      %v1839 = vrot.slane %v197, 2
      %v1840 = vrot.slane %v198, 2
      %v1841 = vsel %vm1718, %v1839, %v1840
      %v1842 = vrot.slane %v199, 2
      %v1843 = vrot.slane %v200, 2
      %v1844 = vsel %vm1718, %v1842, %v1843
      %v1845 = vrot.slane %v201, 2
      %v1846 = vrot.slane %v202, 2
      %v1847 = vsel %vm1718, %v1845, %v1846
      %v1848 = vrot.slane %v203, 2
      %v1849 = vrot.slane %v204, 2
      %v1850 = vsel %vm1718, %v1848, %v1849
      %v1851 = vrot.slane %v205, 2
      %v1852 = vrot.slane %v206, 2
      %v1853 = vsel %vm1718, %v1851, %v1852
      %v1854 = vrot.slane %v207, 2
      %v1855 = vrot.slane %v208, 2
      %v1856 = vsel %vm1718, %v1854, %v1855
      %v1857 = vrot.slane %v209, 2
      %v1858 = vrot.slane %v210, 2
      %v1859 = vsel %vm1718, %v1857, %v1858
      %v1860 = vrot.slane %v211, 2
      %v1861 = vrot.slane %v212, 2
      %v1862 = vsel %vm1718, %v1860, %v1861
      %v1863 = vrot.slane %v213, 2
      %v1864 = vrot.slane %v214, 2
      %v1865 = vsel %vm1718, %v1863, %v1864
      %v1866 = vrot.slane %v215, 2
      %v1867 = vrot.slane %v216, 2
      %v1868 = vsel %vm1718, %v1866, %v1867
      %v1869 = vrot.slane %v217, 2
      %v1870 = vrot.slane %v218, 2
      %v1871 = vsel %vm1718, %v1869, %v1870
      %v1872 = vrot.slane %v219, 2
      %v1873 = vrot.slane %v220, 2
      %v1874 = vsel %vm1718, %v1872, %v1873
      %v1875 = vrot.slane %v221, 2
      %v1876 = vrot.slane %v222, 2
      %v1877 = vsel %vm1718, %v1875, %v1876
      %v1878 = vrot.slane %v223, 2
      %v1879 = vrot.slane %v224, 2
      %v1880 = vsel %vm1718, %v1878, %v1879
      %v1881 = vrot.slane %v225, 2
      %v1882 = vrot.slane %v226, 2
      %v1883 = vsel %vm1718, %v1881, %v1882
      %v1884 = vrot.slane %v227, 2
      %v1885 = vrot.slane %v228, 2
      %v1886 = vsel %vm1718, %v1884, %v1885
      %v1887 = vrot.slane %v229, 2
      %v1888 = vrot.slane %v230, 2
      %v1889 = vsel %vm1718, %v1887, %v1888
      %v1890 = vrot.slane %v231, 2
      %v1891 = vrot.slane %v232, 2
      %v1892 = vsel %vm1718, %v1890, %v1891
      %v1893 = vrot.slane %v233, 2
      %v1894 = vrot.slane %v234, 2
      %v1895 = vsel %vm1718, %v1893, %v1894
      %v1896 = vrot.slane %v235, 2
      %v1897 = vrot.slane %v236, 2
      %v1898 = vsel %vm1718, %v1896, %v1897
      %v1899 = vrot.slane %v237, 2
      %v1900 = vrot.slane %v238, 2
      %v1901 = vsel %vm1718, %v1899, %v1900
      %v1902 = vrot.slane %v239, 2
      %v1903 = vrot.slane %v240, 2
      %v1904 = vsel %vm1718, %v1902, %v1903
      %v1905 = vrot.slane %v241, 2
      %v1906 = vrot.slane %v242, 2
      %v1907 = vsel %vm1718, %v1905, %v1906
      %v1908 = vrot.slane %v243, 2
      %v1909 = vrot.slane %v244, 2
      %v1910 = vsel %vm1718, %v1908, %v1909
      %v1975 = vmax.f32 %v1654, %v1721
      %v1976 = vmax.f32 %v1655, %v1724
      %v1977 = vmax.f32 %v1656, %v1727
      %v1978 = vmax.f32 %v1657, %v1730
      %v1979 = vmax.f32 %v1658, %v1733
      %v1980 = vmax.f32 %v1659, %v1736
      %v1981 = vmax.f32 %v1660, %v1739
      %v1982 = vmax.f32 %v1661, %v1742
      %v1983 = vmax.f32 %v1662, %v1745
      %v1984 = vmax.f32 %v1663, %v1748
      %v1985 = vmax.f32 %v1664, %v1751
      %v1986 = vmax.f32 %v1665, %v1754
      %v1987 = vmax.f32 %v1666, %v1757
      %v1988 = vmax.f32 %v1667, %v1760
      %v1989 = vmax.f32 %v1668, %v1763
      %v1990 = vmax.f32 %v1669, %v1766
      %v1991 = vmax.f32 %v1670, %v1769
      %v1992 = vmax.f32 %v1671, %v1772
      %v1993 = vmax.f32 %v1672, %v1775
      %v1994 = vmax.f32 %v1673, %v1778
      %v1995 = vmax.f32 %v1674, %v1781
      %v1996 = vmax.f32 %v1675, %v1784
      %v1997 = vmax.f32 %v1676, %v1787
      %v1998 = vmax.f32 %v1677, %v1790
      %v1999 = vmax.f32 %v1678, %v1793
      %v2000 = vmax.f32 %v1679, %v1796
      %v2001 = vmax.f32 %v1680, %v1799
      %v2002 = vmax.f32 %v1681, %v1802
      %v2003 = vmax.f32 %v1682, %v1805
      %v2004 = vmax.f32 %v1683, %v1808
      %v2005 = vmax.f32 %v1684, %v1811
      %v2006 = vmax.f32 %v1685, %v1814
      %v2007 = vmax.f32 %v1686, %v1817
      %v2008 = vmax.f32 %v1687, %v1820
      %v2009 = vmax.f32 %v1688, %v1823
      %v2010 = vmax.f32 %v1689, %v1826
      %v2011 = vmax.f32 %v1690, %v1829
      %v2012 = vmax.f32 %v1691, %v1832
      %v2013 = vmax.f32 %v1692, %v1835
      %v2014 = vmax.f32 %v1693, %v1838
      %v2015 = vmax.f32 %v1694, %v1841
      %v2016 = vmax.f32 %v1695, %v1844
      %v2017 = vmax.f32 %v1696, %v1847
      %v2018 = vmax.f32 %v1697, %v1850
      %v2019 = vmax.f32 %v1698, %v1853
      %v2020 = vmax.f32 %v1699, %v1856
      %v2021 = vmax.f32 %v1700, %v1859
      %v2022 = vmax.f32 %v1701, %v1862
      %v2023 = vmax.f32 %v1702, %v1865
      %v2024 = vmax.f32 %v1703, %v1868
      %v2025 = vmax.f32 %v1704, %v1871
      %v2026 = vmax.f32 %v1705, %v1874
      %v2027 = vmax.f32 %v1706, %v1877
      %v2028 = vmax.f32 %v1707, %v1880
      %v2029 = vmax.f32 %v1708, %v1883
      %v2030 = vmax.f32 %v1709, %v1886
      %v2031 = vmax.f32 %v1710, %v1889
      %v2032 = vmax.f32 %v1711, %v1892
      %v2033 = vmax.f32 %v1712, %v1895
      %v2034 = vmax.f32 %v1713, %v1898
      %v2035 = vmax.f32 %v1714, %v1901
      %v2036 = vmax.f32 %v1715, %v1904
      %v2037 = vmax.f32 %v1716, %v1907
      %v2038 = vmax.f32 %v1717, %v1910
      %2039 = vrot.lane.b32.xlu0 %v1721, 127
      %v2040 = vpop.permute.xlu0 %2039
      %2041 = vrot.lane.b32.xlu0 %v1724, 127
      %v2042 = vpop.permute.xlu0 %2041
      %2043 = vrot.lane.b32.xlu0 %v1727, 127
      %v2044 = vpop.permute.xlu0 %2043
      %2045 = vrot.lane.b32.xlu0 %v1730, 127
      %v2046 = vpop.permute.xlu0 %2045
      %2047 = vrot.lane.b32.xlu0 %v1733, 127
      %v2048 = vpop.permute.xlu0 %2047
      %2049 = vrot.lane.b32.xlu0 %v1736, 127
      %v2050 = vpop.permute.xlu0 %2049
      %2051 = vrot.lane.b32.xlu0 %v1739, 127
      %v2052 = vpop.permute.xlu0 %2051
      %2053 = vrot.lane.b32.xlu0 %v1742, 127
      %v2054 = vpop.permute.xlu0 %2053
      %2055 = vrot.lane.b32.xlu0 %v1745, 127
      %v2056 = vpop.permute.xlu0 %2055
      %2057 = vrot.lane.b32.xlu0 %v1748, 127
      %v2058 = vpop.permute.xlu0 %2057
      %2059 = vrot.lane.b32.xlu0 %v1751, 127
      %v2060 = vpop.permute.xlu0 %2059
      %2061 = vrot.lane.b32.xlu0 %v1754, 127
      %v2062 = vpop.permute.xlu0 %2061
      %2063 = vrot.lane.b32.xlu0 %v1757, 127
      %v2064 = vpop.permute.xlu0 %2063
      %2065 = vrot.lane.b32.xlu0 %v1760, 127
      %v2066 = vpop.permute.xlu0 %2065
      %2067 = vrot.lane.b32.xlu0 %v1763, 127
      %v2068 = vpop.permute.xlu0 %2067
      %2069 = vrot.lane.b32.xlu0 %v1766, 127
      %v2070 = vpop.permute.xlu0 %2069
      %2071 = vrot.lane.b32.xlu0 %v1769, 127
      %v2072 = vpop.permute.xlu0 %2071
      %2073 = vrot.lane.b32.xlu0 %v1772, 127
      %v2074 = vpop.permute.xlu0 %2073
      %2075 = vrot.lane.b32.xlu0 %v1775, 127
      %v2076 = vpop.permute.xlu0 %2075
      %2077 = vrot.lane.b32.xlu0 %v1778, 127
      %v2078 = vpop.permute.xlu0 %2077
      %2079 = vrot.lane.b32.xlu0 %v1781, 127
      %v2080 = vpop.permute.xlu0 %2079
      %2081 = vrot.lane.b32.xlu0 %v1784, 127
      %v2082 = vpop.permute.xlu0 %2081
      %2083 = vrot.lane.b32.xlu0 %v1787, 127
      %v2084 = vpop.permute.xlu0 %2083
      %2085 = vrot.lane.b32.xlu0 %v1790, 127
      %v2086 = vpop.permute.xlu0 %2085
      %2087 = vrot.lane.b32.xlu0 %v1793, 127
      %v2088 = vpop.permute.xlu0 %2087
      %2089 = vrot.lane.b32.xlu0 %v1796, 127
      %v2090 = vpop.permute.xlu0 %2089
      %2091 = vrot.lane.b32.xlu0 %v1799, 127
      %v2092 = vpop.permute.xlu0 %2091
      %2093 = vrot.lane.b32.xlu0 %v1802, 127
      %v2094 = vpop.permute.xlu0 %2093
      %2095 = vrot.lane.b32.xlu0 %v1805, 127
      %v2096 = vpop.permute.xlu0 %2095
      %2097 = vrot.lane.b32.xlu0 %v1808, 127
      %v2098 = vpop.permute.xlu0 %2097
      %2099 = vrot.lane.b32.xlu0 %v1811, 127
      %v2100 = vpop.permute.xlu0 %2099
      %2101 = vrot.lane.b32.xlu0 %v1814, 127
      %v2102 = vpop.permute.xlu0 %2101
      %2103 = vrot.lane.b32.xlu0 %v1817, 127
      %v2104 = vpop.permute.xlu0 %2103
      %2105 = vrot.lane.b32.xlu0 %v1820, 127
      %v2106 = vpop.permute.xlu0 %2105
      %2107 = vrot.lane.b32.xlu0 %v1823, 127
      %v2108 = vpop.permute.xlu0 %2107
      %2109 = vrot.lane.b32.xlu0 %v1826, 127
      %v2110 = vpop.permute.xlu0 %2109
      %2111 = vrot.lane.b32.xlu0 %v1829, 127
      %v2112 = vpop.permute.xlu0 %2111
      %2113 = vrot.lane.b32.xlu0 %v1832, 127
      %v2114 = vpop.permute.xlu0 %2113
      %2115 = vrot.lane.b32.xlu0 %v1835, 127
      %v2116 = vpop.permute.xlu0 %2115
      %2117 = vrot.lane.b32.xlu0 %v1838, 127
      %v2118 = vpop.permute.xlu0 %2117
      %2119 = vrot.lane.b32.xlu0 %v1841, 127
      %v2120 = vpop.permute.xlu0 %2119
      %2121 = vrot.lane.b32.xlu0 %v1844, 127
      %v2122 = vpop.permute.xlu0 %2121
      %2123 = vrot.lane.b32.xlu0 %v1847, 127
      %v2124 = vpop.permute.xlu0 %2123
      %2125 = vrot.lane.b32.xlu0 %v1850, 127
      %v2126 = vpop.permute.xlu0 %2125
      %2127 = vrot.lane.b32.xlu0 %v1853, 127
      %v2128 = vpop.permute.xlu0 %2127
      %2129 = vrot.lane.b32.xlu0 %v1856, 127
      %v2130 = vpop.permute.xlu0 %2129
      %2131 = vrot.lane.b32.xlu0 %v1859, 127
      %v2132 = vpop.permute.xlu0 %2131
      %2133 = vrot.lane.b32.xlu0 %v1862, 127
      %v2134 = vpop.permute.xlu0 %2133
      %2135 = vrot.lane.b32.xlu0 %v1865, 127
      %v2136 = vpop.permute.xlu0 %2135
      %2137 = vrot.lane.b32.xlu0 %v1868, 127
      %v2138 = vpop.permute.xlu0 %2137
      %2139 = vrot.lane.b32.xlu0 %v1871, 127
      %v2140 = vpop.permute.xlu0 %2139
      %2141 = vrot.lane.b32.xlu0 %v1874, 127
      %v2142 = vpop.permute.xlu0 %2141
      %2143 = vrot.lane.b32.xlu0 %v1877, 127
      %v2144 = vpop.permute.xlu0 %2143
      %2145 = vrot.lane.b32.xlu0 %v1880, 127
      %v2146 = vpop.permute.xlu0 %2145
      %2147 = vrot.lane.b32.xlu0 %v1883, 127
      %v2148 = vpop.permute.xlu0 %2147
      %2149 = vrot.lane.b32.xlu0 %v1886, 127
      %v2150 = vpop.permute.xlu0 %2149
      %2151 = vrot.lane.b32.xlu0 %v1889, 127
      %v2152 = vpop.permute.xlu0 %2151
      %2153 = vrot.lane.b32.xlu0 %v1892, 127
      %v2154 = vpop.permute.xlu0 %2153
      %2155 = vrot.lane.b32.xlu0 %v1895, 127
      %v2156 = vpop.permute.xlu0 %2155
      %2157 = vrot.lane.b32.xlu0 %v1898, 127
      %v2158 = vpop.permute.xlu0 %2157
      %2159 = vrot.lane.b32.xlu0 %v1901, 127
      %v2160 = vpop.permute.xlu0 %2159
      %2161 = vrot.lane.b32.xlu0 %v1904, 127
      %v2162 = vpop.permute.xlu0 %2161
      %2163 = vrot.lane.b32.xlu0 %v1907, 127
      %v2164 = vpop.permute.xlu0 %2163
      %2165 = vrot.lane.b32.xlu0 %v1910, 127
      %v2166 = vpop.permute.xlu0 %2165
      %v2231 = vmax.f32 %v1975, %v2040
      %v2232 = vmax.f32 %v1976, %v2042
      %v2233 = vmax.f32 %v1977, %v2044
      %v2234 = vmax.f32 %v1978, %v2046
      %v2235 = vmax.f32 %v1979, %v2048
      %v2236 = vmax.f32 %v1980, %v2050
      %v2237 = vmax.f32 %v1981, %v2052
      %v2238 = vmax.f32 %v1982, %v2054
      %v2239 = vmax.f32 %v1983, %v2056
      %v2240 = vmax.f32 %v1984, %v2058
      %v2241 = vmax.f32 %v1985, %v2060
      %v2242 = vmax.f32 %v1986, %v2062
      %v2243 = vmax.f32 %v1987, %v2064
      %v2244 = vmax.f32 %v1988, %v2066
      %v2245 = vmax.f32 %v1989, %v2068
      %v2246 = vmax.f32 %v1990, %v2070
      %v2247 = vmax.f32 %v1991, %v2072
      %v2248 = vmax.f32 %v1992, %v2074
      %v2249 = vmax.f32 %v1993, %v2076
      %v2250 = vmax.f32 %v1994, %v2078
      %v2251 = vmax.f32 %v1995, %v2080
      %v2252 = vmax.f32 %v1996, %v2082
      %v2253 = vmax.f32 %v1997, %v2084
      %v2254 = vmax.f32 %v1998, %v2086
      %v2255 = vmax.f32 %v1999, %v2088
      %v2256 = vmax.f32 %v2000, %v2090
      %v2257 = vmax.f32 %v2001, %v2092
      %v2258 = vmax.f32 %v2002, %v2094
      %v2259 = vmax.f32 %v2003, %v2096
      %v2260 = vmax.f32 %v2004, %v2098
      %v2261 = vmax.f32 %v2005, %v2100
      %v2262 = vmax.f32 %v2006, %v2102
      %v2263 = vmax.f32 %v2007, %v2104
      %v2264 = vmax.f32 %v2008, %v2106
      %v2265 = vmax.f32 %v2009, %v2108
      %v2266 = vmax.f32 %v2010, %v2110
      %v2267 = vmax.f32 %v2011, %v2112
      %v2268 = vmax.f32 %v2012, %v2114
      %v2269 = vmax.f32 %v2013, %v2116
      %v2270 = vmax.f32 %v2014, %v2118
      %v2271 = vmax.f32 %v2015, %v2120
      %v2272 = vmax.f32 %v2016, %v2122
      %v2273 = vmax.f32 %v2017, %v2124
      %v2274 = vmax.f32 %v2018, %v2126
      %v2275 = vmax.f32 %v2019, %v2128
      %v2276 = vmax.f32 %v2020, %v2130
      %v2277 = vmax.f32 %v2021, %v2132
      %v2278 = vmax.f32 %v2022, %v2134
      %v2279 = vmax.f32 %v2023, %v2136
      %v2280 = vmax.f32 %v2024, %v2138
      %v2281 = vmax.f32 %v2025, %v2140
      %v2282 = vmax.f32 %v2026, %v2142
      %v2283 = vmax.f32 %v2027, %v2144
      %v2284 = vmax.f32 %v2028, %v2146
      %v2285 = vmax.f32 %v2029, %v2148
      %v2286 = vmax.f32 %v2030, %v2150
      %v2287 = vmax.f32 %v2031, %v2152
      %v2288 = vmax.f32 %v2032, %v2154
      %v2289 = vmax.f32 %v2033, %v2156
      %v2290 = vmax.f32 %v2034, %v2158
      %v2291 = vmax.f32 %v2035, %v2160
      %v2292 = vmax.f32 %v2036, %v2162
      %v2293 = vmax.f32 %v2037, %v2164
      %v2294 = vmax.f32 %v2038, %v2166
      %2295 = vrot.lane.b32.xlu0 %v1721, 126
      %v2296 = vpop.permute.xlu0 %2295
      %2297 = vrot.lane.b32.xlu0 %v1724, 126
      %v2298 = vpop.permute.xlu0 %2297
      %2299 = vrot.lane.b32.xlu0 %v1727, 126
      %v2300 = vpop.permute.xlu0 %2299
      %2301 = vrot.lane.b32.xlu0 %v1730, 126
      %v2302 = vpop.permute.xlu0 %2301
      %2303 = vrot.lane.b32.xlu0 %v1733, 126
      %v2304 = vpop.permute.xlu0 %2303
      %2305 = vrot.lane.b32.xlu0 %v1736, 126
      %v2306 = vpop.permute.xlu0 %2305
      %2307 = vrot.lane.b32.xlu0 %v1739, 126
      %v2308 = vpop.permute.xlu0 %2307
      %2309 = vrot.lane.b32.xlu0 %v1742, 126
      %v2310 = vpop.permute.xlu0 %2309
      %2311 = vrot.lane.b32.xlu0 %v1745, 126
      %v2312 = vpop.permute.xlu0 %2311
      %2313 = vrot.lane.b32.xlu0 %v1748, 126
      %v2314 = vpop.permute.xlu0 %2313
      %2315 = vrot.lane.b32.xlu0 %v1751, 126
      %v2316 = vpop.permute.xlu0 %2315
      %2317 = vrot.lane.b32.xlu0 %v1754, 126
      %v2318 = vpop.permute.xlu0 %2317
      %2319 = vrot.lane.b32.xlu0 %v1757, 126
      %v2320 = vpop.permute.xlu0 %2319
      %2321 = vrot.lane.b32.xlu0 %v1760, 126
      %v2322 = vpop.permute.xlu0 %2321
      %2323 = vrot.lane.b32.xlu0 %v1763, 126
      %v2324 = vpop.permute.xlu0 %2323
      %2325 = vrot.lane.b32.xlu0 %v1766, 126
      %v2326 = vpop.permute.xlu0 %2325
      %2327 = vrot.lane.b32.xlu0 %v1769, 126
      %v2328 = vpop.permute.xlu0 %2327
      %2329 = vrot.lane.b32.xlu0 %v1772, 126
      %v2330 = vpop.permute.xlu0 %2329
      %2331 = vrot.lane.b32.xlu0 %v1775, 126
      %v2332 = vpop.permute.xlu0 %2331
      %2333 = vrot.lane.b32.xlu0 %v1778, 126
      %v2334 = vpop.permute.xlu0 %2333
      %2335 = vrot.lane.b32.xlu0 %v1781, 126
      %v2336 = vpop.permute.xlu0 %2335
      %2337 = vrot.lane.b32.xlu0 %v1784, 126
      %v2338 = vpop.permute.xlu0 %2337
      %2339 = vrot.lane.b32.xlu0 %v1787, 126
      %v2340 = vpop.permute.xlu0 %2339
      %2341 = vrot.lane.b32.xlu0 %v1790, 126
      %v2342 = vpop.permute.xlu0 %2341
      %2343 = vrot.lane.b32.xlu0 %v1793, 126
      %v2344 = vpop.permute.xlu0 %2343
      %2345 = vrot.lane.b32.xlu0 %v1796, 126
      %v2346 = vpop.permute.xlu0 %2345
      %2347 = vrot.lane.b32.xlu0 %v1799, 126
      %v2348 = vpop.permute.xlu0 %2347
      %2349 = vrot.lane.b32.xlu0 %v1802, 126
      %v2350 = vpop.permute.xlu0 %2349
      %2351 = vrot.lane.b32.xlu0 %v1805, 126
      %v2352 = vpop.permute.xlu0 %2351
      %2353 = vrot.lane.b32.xlu0 %v1808, 126
      %v2354 = vpop.permute.xlu0 %2353
      %2355 = vrot.lane.b32.xlu0 %v1811, 126
      %v2356 = vpop.permute.xlu0 %2355
      %2357 = vrot.lane.b32.xlu0 %v1814, 126
      %v2358 = vpop.permute.xlu0 %2357
      %2359 = vrot.lane.b32.xlu0 %v1817, 126
      %v2360 = vpop.permute.xlu0 %2359
      %2361 = vrot.lane.b32.xlu0 %v1820, 126
      %v2362 = vpop.permute.xlu0 %2361
      %2363 = vrot.lane.b32.xlu0 %v1823, 126
      %v2364 = vpop.permute.xlu0 %2363
      %2365 = vrot.lane.b32.xlu0 %v1826, 126
      %v2366 = vpop.permute.xlu0 %2365
      %2367 = vrot.lane.b32.xlu0 %v1829, 126
      %v2368 = vpop.permute.xlu0 %2367
      %2369 = vrot.lane.b32.xlu0 %v1832, 126
      %v2370 = vpop.permute.xlu0 %2369
      %2371 = vrot.lane.b32.xlu0 %v1835, 126
      %v2372 = vpop.permute.xlu0 %2371
      %2373 = vrot.lane.b32.xlu0 %v1838, 126
      %v2374 = vpop.permute.xlu0 %2373
      %2375 = vrot.lane.b32.xlu0 %v1841, 126
      %v2376 = vpop.permute.xlu0 %2375
      %2377 = vrot.lane.b32.xlu0 %v1844, 126
      %v2378 = vpop.permute.xlu0 %2377
      %2379 = vrot.lane.b32.xlu0 %v1847, 126
      %v2380 = vpop.permute.xlu0 %2379
      %2381 = vrot.lane.b32.xlu0 %v1850, 126
      %v2382 = vpop.permute.xlu0 %2381
      %2383 = vrot.lane.b32.xlu0 %v1853, 126
      %v2384 = vpop.permute.xlu0 %2383
      %2385 = vrot.lane.b32.xlu0 %v1856, 126
      %v2386 = vpop.permute.xlu0 %2385
      %2387 = vrot.lane.b32.xlu0 %v1859, 126
      %v2388 = vpop.permute.xlu0 %2387
      %2389 = vrot.lane.b32.xlu0 %v1862, 126
      %v2390 = vpop.permute.xlu0 %2389
      %2391 = vrot.lane.b32.xlu0 %v1865, 126
      %v2392 = vpop.permute.xlu0 %2391
      %2393 = vrot.lane.b32.xlu0 %v1868, 126
      %v2394 = vpop.permute.xlu0 %2393
      %2395 = vrot.lane.b32.xlu0 %v1871, 126
      %v2396 = vpop.permute.xlu0 %2395
      %2397 = vrot.lane.b32.xlu0 %v1874, 126
      %v2398 = vpop.permute.xlu0 %2397
      %2399 = vrot.lane.b32.xlu0 %v1877, 126
      %v2400 = vpop.permute.xlu0 %2399
      %2401 = vrot.lane.b32.xlu0 %v1880, 126
      %v2402 = vpop.permute.xlu0 %2401
      %2403 = vrot.lane.b32.xlu0 %v1883, 126
      %v2404 = vpop.permute.xlu0 %2403
      %2405 = vrot.lane.b32.xlu0 %v1886, 126
      %v2406 = vpop.permute.xlu0 %2405
      %2407 = vrot.lane.b32.xlu0 %v1889, 126
      %v2408 = vpop.permute.xlu0 %2407
      %2409 = vrot.lane.b32.xlu0 %v1892, 126
      %v2410 = vpop.permute.xlu0 %2409
      %2411 = vrot.lane.b32.xlu0 %v1895, 126
      %v2412 = vpop.permute.xlu0 %2411
      %2413 = vrot.lane.b32.xlu0 %v1898, 126
      %v2414 = vpop.permute.xlu0 %2413
      %2415 = vrot.lane.b32.xlu0 %v1901, 126
      %v2416 = vpop.permute.xlu0 %2415
      %2417 = vrot.lane.b32.xlu0 %v1904, 126
      %v2418 = vpop.permute.xlu0 %2417
      %2419 = vrot.lane.b32.xlu0 %v1907, 126
      %v2420 = vpop.permute.xlu0 %2419
      %2421 = vrot.lane.b32.xlu0 %v1910, 126
      %v2422 = vpop.permute.xlu0 %2421
      %v2487 = vmax.f32 %v2231, %v2296
      %v2488 = vmax.f32 %v2232, %v2298
      %v2489 = vmax.f32 %v2233, %v2300
      %v2490 = vmax.f32 %v2234, %v2302
      %v2491 = vmax.f32 %v2235, %v2304
      %v2492 = vmax.f32 %v2236, %v2306
      %v2493 = vmax.f32 %v2237, %v2308
      %v2494 = vmax.f32 %v2238, %v2310
      %v2495 = vmax.f32 %v2239, %v2312
      %v2496 = vmax.f32 %v2240, %v2314
      %v2497 = vmax.f32 %v2241, %v2316
      %v2498 = vmax.f32 %v2242, %v2318
      %v2499 = vmax.f32 %v2243, %v2320
      %v2500 = vmax.f32 %v2244, %v2322
      %v2501 = vmax.f32 %v2245, %v2324
      %v2502 = vmax.f32 %v2246, %v2326
      %v2503 = vmax.f32 %v2247, %v2328
      %v2504 = vmax.f32 %v2248, %v2330
      %v2505 = vmax.f32 %v2249, %v2332
      %v2506 = vmax.f32 %v2250, %v2334
      %v2507 = vmax.f32 %v2251, %v2336
      %v2508 = vmax.f32 %v2252, %v2338
      %v2509 = vmax.f32 %v2253, %v2340
      %v2510 = vmax.f32 %v2254, %v2342
      %v2511 = vmax.f32 %v2255, %v2344
      %v2512 = vmax.f32 %v2256, %v2346
      %v2513 = vmax.f32 %v2257, %v2348
      %v2514 = vmax.f32 %v2258, %v2350
      %v2515 = vmax.f32 %v2259, %v2352
      %v2516 = vmax.f32 %v2260, %v2354
      %v2517 = vmax.f32 %v2261, %v2356
      %v2518 = vmax.f32 %v2262, %v2358
      %v2519 = vmax.f32 %v2263, %v2360
      %v2520 = vmax.f32 %v2264, %v2362
      %v2521 = vmax.f32 %v2265, %v2364
      %v2522 = vmax.f32 %v2266, %v2366
      %v2523 = vmax.f32 %v2267, %v2368
      %v2524 = vmax.f32 %v2268, %v2370
      %v2525 = vmax.f32 %v2269, %v2372
      %v2526 = vmax.f32 %v2270, %v2374
      %v2527 = vmax.f32 %v2271, %v2376
      %v2528 = vmax.f32 %v2272, %v2378
      %v2529 = vmax.f32 %v2273, %v2380
      %v2530 = vmax.f32 %v2274, %v2382
      %v2531 = vmax.f32 %v2275, %v2384
      %v2532 = vmax.f32 %v2276, %v2386
      %v2533 = vmax.f32 %v2277, %v2388
      %v2534 = vmax.f32 %v2278, %v2390
      %v2535 = vmax.f32 %v2279, %v2392
      %v2536 = vmax.f32 %v2280, %v2394
      %v2537 = vmax.f32 %v2281, %v2396
      %v2538 = vmax.f32 %v2282, %v2398
      %v2539 = vmax.f32 %v2283, %v2400
      %v2540 = vmax.f32 %v2284, %v2402
      %v2541 = vmax.f32 %v2285, %v2404
      %v2542 = vmax.f32 %v2286, %v2406
      %v2543 = vmax.f32 %v2287, %v2408
      %v2544 = vmax.f32 %v2288, %v2410
      %v2545 = vmax.f32 %v2289, %v2412
      %v2546 = vmax.f32 %v2290, %v2414
      %v2547 = vmax.f32 %v2291, %v2416
      %v2548 = vmax.f32 %v2292, %v2418
      %v2549 = vmax.f32 %v2293, %v2420
      %v2550 = vmax.f32 %v2294, %v2422
      %vm2551 = vcmask 64512
      %2552 = vst.msk [vmem:[%s116] sm:$0xff] %vm2551, %v2487
      %2553 = vst.msk [vmem:[%s116 + $0x8] sm:$0xff] %vm2551, %v2488
      %2554 = vst.msk [vmem:[%s116 + $0x10] sm:$0xff] %vm2551, %v2489
      %2555 = vst.msk [vmem:[%s116 + $0x18] sm:$0xff] %vm2551, %v2490
      %2556 = vst.msk [vmem:[%s116 + $0x20] sm:$0xff] %vm2551, %v2491
      %2557 = vst.msk [vmem:[%s116 + $0x28] sm:$0xff] %vm2551, %v2492
      %2558 = vst.msk [vmem:[%s116 + $0x30] sm:$0xff] %vm2551, %v2493
      %2559 = vst.msk [vmem:[%s116 + $0x38] sm:$0xff] %vm2551, %v2494
      %2560 = vst.msk [vmem:[%s116 + $0x40] sm:$0xff] %vm2551, %v2495
      %2561 = vst.msk [vmem:[%s116 + $0x48] sm:$0xff] %vm2551, %v2496
      %2562 = vst.msk [vmem:[%s116 + $0x50] sm:$0xff] %vm2551, %v2497
      %2563 = vst.msk [vmem:[%s116 + $0x58] sm:$0xff] %vm2551, %v2498
      %2564 = vst.msk [vmem:[%s116 + $0x60] sm:$0xff] %vm2551, %v2499
      %2565 = vst.msk [vmem:[%s116 + $0x68] sm:$0xff] %vm2551, %v2500
      %2566 = vst.msk [vmem:[%s116 + $0x70] sm:$0xff] %vm2551, %v2501
      %2567 = vst.msk [vmem:[%s116 + $0x78] sm:$0xff] %vm2551, %v2502
      %2568 = vst.msk [vmem:[%s116 + $0x80] sm:$0xff] %vm2551, %v2503
      %2569 = vst.msk [vmem:[%s116 + $0x88] sm:$0xff] %vm2551, %v2504
      %2570 = vst.msk [vmem:[%s116 + $0x90] sm:$0xff] %vm2551, %v2505
      %2571 = vst.msk [vmem:[%s116 + $0x98] sm:$0xff] %vm2551, %v2506
      %2572 = vst.msk [vmem:[%s116 + $0xa0] sm:$0xff] %vm2551, %v2507
      %2573 = vst.msk [vmem:[%s116 + $0xa8] sm:$0xff] %vm2551, %v2508
      %2574 = vst.msk [vmem:[%s116 + $0xb0] sm:$0xff] %vm2551, %v2509
      %2575 = vst.msk [vmem:[%s116 + $0xb8] sm:$0xff] %vm2551, %v2510
      %2576 = vst.msk [vmem:[%s116 + $0xc0] sm:$0xff] %vm2551, %v2511
      %2577 = vst.msk [vmem:[%s116 + $0xc8] sm:$0xff] %vm2551, %v2512
      %2578 = vst.msk [vmem:[%s116 + $0xd0] sm:$0xff] %vm2551, %v2513
      %2579 = vst.msk [vmem:[%s116 + $0xd8] sm:$0xff] %vm2551, %v2514
      %2580 = vst.msk [vmem:[%s116 + $0xe0] sm:$0xff] %vm2551, %v2515
      %2581 = vst.msk [vmem:[%s116 + $0xe8] sm:$0xff] %vm2551, %v2516
      %2582 = vst.msk [vmem:[%s116 + $0xf0] sm:$0xff] %vm2551, %v2517
      %2583 = vst.msk [vmem:[%s116 + $0xf8] sm:$0xff] %vm2551, %v2518
      %2584 = vst.msk [vmem:[%s116 + $0x100] sm:$0xff] %vm2551, %v2519
      %2585 = vst.msk [vmem:[%s116 + $0x108] sm:$0xff] %vm2551, %v2520
      %2586 = vst.msk [vmem:[%s116 + $0x110] sm:$0xff] %vm2551, %v2521
      %2587 = vst.msk [vmem:[%s116 + $0x118] sm:$0xff] %vm2551, %v2522
      %2588 = vst.msk [vmem:[%s116 + $0x120] sm:$0xff] %vm2551, %v2523
      %2589 = vst.msk [vmem:[%s116 + $0x128] sm:$0xff] %vm2551, %v2524
      %2590 = vst.msk [vmem:[%s116 + $0x130] sm:$0xff] %vm2551, %v2525
      %2591 = vst.msk [vmem:[%s116 + $0x138] sm:$0xff] %vm2551, %v2526
      %2592 = vst.msk [vmem:[%s116 + $0x140] sm:$0xff] %vm2551, %v2527
      %2593 = vst.msk [vmem:[%s116 + $0x148] sm:$0xff] %vm2551, %v2528
      %2594 = vst.msk [vmem:[%s116 + $0x150] sm:$0xff] %vm2551, %v2529
      %2595 = vst.msk [vmem:[%s116 + $0x158] sm:$0xff] %vm2551, %v2530
      %2596 = vst.msk [vmem:[%s116 + $0x160] sm:$0xff] %vm2551, %v2531
      %2597 = vst.msk [vmem:[%s116 + $0x168] sm:$0xff] %vm2551, %v2532
      %2598 = vst.msk [vmem:[%s116 + $0x170] sm:$0xff] %vm2551, %v2533
      %2599 = vst.msk [vmem:[%s116 + $0x178] sm:$0xff] %vm2551, %v2534
      %2600 = vst.msk [vmem:[%s116 + $0x180] sm:$0xff] %vm2551, %v2535
      %2601 = vst.msk [vmem:[%s116 + $0x188] sm:$0xff] %vm2551, %v2536
      %2602 = vst.msk [vmem:[%s116 + $0x190] sm:$0xff] %vm2551, %v2537
      %2603 = vst.msk [vmem:[%s116 + $0x198] sm:$0xff] %vm2551, %v2538
      %2604 = vst.msk [vmem:[%s116 + $0x1a0] sm:$0xff] %vm2551, %v2539
      %2605 = vst.msk [vmem:[%s116 + $0x1a8] sm:$0xff] %vm2551, %v2540
      %2606 = vst.msk [vmem:[%s116 + $0x1b0] sm:$0xff] %vm2551, %v2541
      %2607 = vst.msk [vmem:[%s116 + $0x1b8] sm:$0xff] %vm2551, %v2542
      %2608 = vst.msk [vmem:[%s116 + $0x1c0] sm:$0xff] %vm2551, %v2543
      %2609 = vst.msk [vmem:[%s116 + $0x1c8] sm:$0xff] %vm2551, %v2544
      %2610 = vst.msk [vmem:[%s116 + $0x1d0] sm:$0xff] %vm2551, %v2545
      %2611 = vst.msk [vmem:[%s116 + $0x1d8] sm:$0xff] %vm2551, %v2546
      %2612 = vst.msk [vmem:[%s116 + $0x1e0] sm:$0xff] %vm2551, %v2547
      %2613 = vst.msk [vmem:[%s116 + $0x1e8] sm:$0xff] %vm2551, %v2548
      %2614 = vst.msk [vmem:[%s116 + $0x1f0] sm:$0xff] %vm2551, %v2549
      %2615 = vst.msk [vmem:[%s116 + $0x1f8] sm:$0xff] %vm2551, %v2550
      %p2616 = scmp.lt.s32.totalorder %s12, 1
      %s2617 = scalar_select %p2616, %s12, 1
      %s2618 = smul.addr %s2617, 64
      %s2619 = smul.addr %s2618, 8
      %s2620 = scalar_lea.vmem %s1, %s2619
      // Predicated region
      $region25: #{stem_forward.3} parent=23 // pred_check
        %p2621 = pneg %p56
      $region26: #{stem_forward.3} parent=23 // pred_check_branch
        %2623 = sbr.rel (%p2621) target = $region28
      $region27: #{stem_forward.3} parent=23 // pred_region
        _
      $region28: #{stem_forward.3} parent=23 // pred_fallthru
        _
    $region24: #{stem_forward.3} parent=5 // pred_fallthru
      _
    %p2624 = scmp.le.s32.totalorder 2, %s7
    // Predicated region
    $region29: #{stem_forward.3} parent=5 // pred_check
      %p2625 = pneg %p2624
    $region30: #{stem_forward.3} parent=5 // pred_check_branch
      %2627 = sbr.rel (%p2625) target = $region32
    $region31: #{stem_forward.3} parent=5 // pred_region
      %s2628 = ssub.s32 %s7, 2
      // Predicated region
      $region33: #{stem_forward.3} parent=31 // pred_check
        %p2629 = pneg %p62
      $region34: #{stem_forward.3} parent=31 // pred_check_branch
        %2631 = sbr.rel (%p2629) target = $region36
      $region35: #{stem_forward.3} parent=31 // pred_region
        %p2632 = scmp.lt.s32.totalorder %s13, 1
        %s2633 = scalar_select %p2632, %s13, 1
        %s2634 = smul.addr %s2633, 64
        %s2635 = smul.addr %s2634, 8
        %s2636 = scalar_lea.vmem %s1, %s2635
      $region36: #{stem_forward.3} parent=31 // pred_fallthru
        _
    $region32: #{stem_forward.3} parent=5 // pred_fallthru
      _
  $region6: #{stem_forward.3} parent=0 // loop_footer
    %s11 = sadd.s32 1, %s7
  $region7: #{stem_forward.3} parent=0 // loop_footer_branch
    %6 = sbr.rel target = $region3
  $region8: #{stem_forward.3} parent=0 // loop_exit
    _

</llo_original>
